<compile_context>
chip_gen: v7x
topology: tpu7x:2x2x1
jax: 0.10.0
libtpu: 0.0.40
codegen_flags: <defaults>
</compile_context>

<pallas_src>
import functools

import numpy as np
import jax
import jax.numpy as jnp
from jax.experimental import pallas as pl
from jax.experimental.pallas import tpu as pltpu


_GEMM_DTYPE = jnp.bfloat16          # MXU operand dtype (accumulation is always f32)

_COMPILER_PARAMS = pltpu.CompilerParams(
    dimension_semantics=("parallel",),       # per-image grid steps are independent
    vmem_limit_bytes=32 * 1024 * 1024,
)


def _round_up(x, m):
    return ((x + m - 1) // m) * m


def _pack_w(w_oihw):
    """torch (Cout, Cin, KH, KW) -> (Cout, KH*KW*Cin), matching the in-kernel tap ordering."""
    co = w_oihw.shape[0]
    return jnp.transpose(w_oihw, (0, 2, 3, 1)).reshape(co, -1)


# ----------------------------- in-kernel building blocks -----------------------------

def _downsample_into_xext(ph_ref, dmask_ref, wd_ref, bd_ref, xext_ref, tapsd_ref, c):
    """Strided downsample conv as one GEMM over in-VMEM taps, then LeakyReLU(0.2).

    The taps come from the space-to-depth phase layout (stride-1 shifts of phase grids).
    The masked result is embedded directly into the guarded, zero-padded flattened layout
    that the GRU convolutions consume (xext_ref) -- it never round-trips HBM.
    """
    cinp, cx = c["cin_p"], c["cx"]
    dk, ds = c["dk"], c["ds"]
    wgp, guard, le, ld = c["wgp"], c["guard"], c["le"], c["ld"]
    for kh in range(dk):
        for kw in range(dk):
            phase = (kh % ds) * ds + (kw % ds)
            shift = (kh // ds) * wgp + (kw // ds)
            t = kh * dk + kw
            tapsd_ref[t * cinp:(t + 1) * cinp, :] = (
                ph_ref[phase * cinp:(phase + 1) * cinp, shift:shift + ld])
    z = jnp.dot(wd_ref[...], tapsd_ref[...], preferred_element_type=jnp.float32)
    z = z + bd_ref[...]
    x = jnp.where(z >= 0.0, z, 0.2 * z) * dmask_ref[...]     # (cx, ld) f32, halo columns zeroed
    xext_ref[...] = jnp.zeros((cx, le), xext_ref.dtype)
    xext_ref[:, 2 * guard:2 * guard + ld] = x.astype(xext_ref.dtype)


def _build_taps(src_ref, dst_ref, rows, c):
    """Stride-1 conv taps: dst[(kh*gk+kw)*rows : +rows, :] = src[:, shift(kh,kw) : +lc]."""
    gk, gp, wgp, guard, lc = c["gk"], c["gp"], c["wgp"], c["guard"], c["lc"]
    t = 0
    for kh in range(gk):
        for kw in range(gk):
            s = guard + (kh - gp) * wgp + (kw - gp)
            dst_ref[t * rows:(t + 1) * rows, :] = src_ref[:, s:s + lc].astype(dst_ref.dtype)
            t += 1


# ----------------------------- fused per-cell kernels -----------------------------

def _cell_kernel(ph_ref, h_ref, dmask_ref, wd_ref, bd_ref, wx_ref, bx_ref,
                 whur_ref, who_ref, newh_ref,
                 xext_ref, rhext_ref, tapsd_ref, tapsx_ref, tapsh_ref, tapsr_ref, *, c):
    ch = c["ch"]
    guard, lc, le = c["guard"], c["lc"], c["le"]

    # ---- CNN2D_cell: downsample conv + LeakyReLU, staged in VMEM in the GRU layout ----
    _downsample_into_xext(ph_ref, dmask_ref, wd_ref, bd_ref, xext_ref, tapsd_ref, c)

    # ---- ConvGRU gate convolutions: one wide x-side GEMM + one h-side GEMM ----
    _build_taps(xext_ref, tapsx_ref, c["cx"], c)
    _build_taps(h_ref, tapsh_ref, ch, c)
    zx = jnp.dot(wx_ref[...], tapsx_ref[...], preferred_element_type=jnp.float32)
    zx = zx + bx_ref[...]                                    # (3*ch, lc) = [u | r | o_x]
    zh = jnp.dot(whur_ref[...], tapsh_ref[...], preferred_element_type=jnp.float32)
    u = jax.nn.sigmoid(zx[0:ch] + zh[0:ch])
    r = jax.nn.sigmoid(zx[ch:2 * ch] + zh[ch:2 * ch])
    h_c = h_ref[:, guard:guard + lc]                         # (ch, lc) f32
    rh = r * h_c                                             # halo stays exactly zero (h halo == 0)

    # ---- out convolution on r*h (x-side contribution is zx[2ch:3ch]); rh never leaves VMEM ----
    rhext_ref[...] = jnp.zeros((ch, le), rhext_ref.dtype)
    rhext_ref[:, guard:guard + lc] = rh.astype(rhext_ref.dtype)
    _build_taps(rhext_ref, tapsr_ref, ch, c)
    zo = jnp.dot(who_ref[...], tapsr_ref[...], preferred_element_type=jnp.float32)
    o = jnp.tanh(zx[2 * ch:3 * ch] + zo)
    newh_ref[...] = h_c * (1.0 - u) + o * u


def _cell_zeroh_kernel(ph_ref, dmask_ref, wd_ref, bd_ref, wx_ref, bx_ref, newh_ref,
                       xext_ref, tapsd_ref, tapsx_ref, *, c):
    """Whole cell when the previous hidden is zero (exact collapse):
       new_h = tanh(conv_o_x(x) + bo) * sigmoid(conv_u_x(x) + bu)."""
    ch = c["ch"]
    _downsample_into_xext(ph_ref, dmask_ref, wd_ref, bd_ref, xext_ref, tapsd_ref, c)
    _build_taps(xext_ref, tapsx_ref, c["cx"], c)
    zx = jnp.dot(wx_ref[...], tapsx_ref[...], preferred_element_type=jnp.float32)
    zx = zx + bx_ref[...]                                    # (2*ch, lc) = [u | o]
    u = jax.nn.sigmoid(zx[0:ch])
    o = jnp.tanh(zx[ch:2 * ch])
    newh_ref[...] = o * u


# ----------------------------- pallas_call wrappers -----------------------------

def _cell_call(ph, h_ext, dmask, p, c, n):
    cx, ch = c["cx"], c["ch"]
    kernel = functools.partial(_cell_kernel, c=c)
    return pl.pallas_call(
        kernel,
        out_shape=jax.ShapeDtypeStruct((n, ch, c["lc"]), jnp.float32),
        grid=(n,),
        in_specs=[
            pl.BlockSpec((None, ph.shape[1], ph.shape[2]), lambda i: (i, 0, 0)),
            pl.BlockSpec((None, ch, c["le"]), lambda i: (i, 0, 0)),
            pl.BlockSpec((1, c["ld"]), lambda i: (0, 0)),
            pl.BlockSpec(p["wd"].shape, lambda i: (0, 0)),
            pl.BlockSpec(p["bd"].shape, lambda i: (0, 0)),
            pl.BlockSpec(p["wx3"].shape, lambda i: (0, 0)),
            pl.BlockSpec(p["bx3"].shape, lambda i: (0, 0)),
            pl.BlockSpec(p["whur"].shape, lambda i: (0, 0)),
            pl.BlockSpec(p["who"].shape, lambda i: (0, 0)),
        ],
        out_specs=pl.BlockSpec((None, ch, c["lc"]), lambda i: (i, 0, 0)),
        scratch_shapes=[
            pltpu.VMEM((cx, c["le"]), _GEMM_DTYPE),                               # x_ext
            pltpu.VMEM((ch, c["le"]), _GEMM_DTYPE),                               # rh_ext
            pltpu.VMEM((c["dk"] * c["dk"] * c["cin_p"], c["ld"]), _GEMM_DTYPE),   # downsample taps
            pltpu.VMEM((c["gk"] * c["gk"] * cx, c["lc"]), _GEMM_DTYPE),           # x taps
            pltpu.VMEM((c["gk"] * c["gk"] * ch, c["lc"]), _GEMM_DTYPE),           # h taps
            pltpu.VMEM((c["gk"] * c["gk"] * ch, c["lc"]), _GEMM_DTYPE),           # r*h taps
        ],
        compiler_params=_COMPILER_PARAMS,
    )(ph, h_ext, dmask, p["wd"], p["bd"], p["wx3"], p["bx3"], p["whur"], p["who"])


def _cell_zeroh_call(ph, dmask, p, c, n):
    cx, ch = c["cx"], c["ch"]
    kernel = functools.partial(_cell_zeroh_kernel, c=c)
    return pl.pallas_call(
        kernel,
        out_shape=jax.ShapeDtypeStruct((n, ch, c["lc"]), jnp.float32),
        grid=(n,),
        in_specs=[
            pl.BlockSpec((None, ph.shape[1], ph.shape[2]), lambda i: (i, 0, 0)),
            pl.BlockSpec((1, c["ld"]), lambda i: (0, 0)),
            pl.BlockSpec(p["wd"].shape, lambda i: (0, 0)),
            pl.BlockSpec(p["bd"].shape, lambda i: (0, 0)),
            pl.BlockSpec(p["wx2"].shape, lambda i: (0, 0)),
            pl.BlockSpec(p["bx2"].shape, lambda i: (0, 0)),
        ],
        out_specs=pl.BlockSpec((None, ch, c["lc"]), lambda i: (i, 0, 0)),
        scratch_shapes=[
            pltpu.VMEM((cx, c["le"]), _GEMM_DTYPE),
            pltpu.VMEM((c["dk"] * c["dk"] * c["cin_p"], c["ld"]), _GEMM_DTYPE),
            pltpu.VMEM((c["gk"] * c["gk"] * cx, c["lc"]), _GEMM_DTYPE),
        ],
        compiler_params=_COMPILER_PARAMS,
    )(ph, dmask, p["wd"], p["bd"], p["wx2"], p["bx2"])


# ----------------------------- static per-cell geometry -----------------------------

def _derive_cell(cfg, h, w):
    dk, ds, dp, gk, gs, gp, cin, cx, ch = cfg
    assert gs == 1, "ConvGRU stride must be 1"
    assert 2 * gp == gk - 1, "ConvGRU conv must preserve the spatial size"
    ho = (h + 2 * dp - dk) // ds + 1
    wo = (w + 2 * dp - dk) // ds + 1
    assert ho >= 1 and wo >= 1
    hk = (dk - 1) // ds
    assert 2 * gp >= hk, "layout alignment requires 2*gru_p >= (down_k-1)//down_s"
    hgp, wgp = ho + 2 * gp, wo + 2 * gp
    guard = gp * wgp + gp                      # max |tap shift| of the GRU convs
    l_img = hgp * wgp                          # per-image padded-flattened length
    lc = _round_up(l_img, 128)                 # computed / output lane length
    le = _round_up(2 * guard + lc, 128)        # guarded activation lane length
    ld = _round_up(ho * wgp, 128)              # downsample-GEMM lane length
    hph = ho + hk                              # phase-grid rows needed
    lph = _round_up(hk * wgp + hk + ld, 128)   # flattened phase-grid lane length
    cin_p = _round_up(cin, 8)
    return dict(dk=dk, ds=ds, dp=dp, gk=gk, gp=gp, cin=cin, cin_p=cin_p, cx=cx, ch=ch,
                ho=ho, wo=wo, hgp=hgp, wgp=wgp, guard=guard,
                l_img=l_img, lc=lc, le=le, ld=ld, hph=hph, lph=lph)


# ----------------------------- XLA glue (1x-traffic layout prep) -----------------------------

def _phase_decompose(a_nchw, c):
    """Space-to-depth of the zero-padded input: (N, ds*ds*Cin_p, Lph) bf16."""
    n, cin, _, _ = a_nchw.shape
    ds, dp = c["ds"], c["dp"]
    cin_p, hph, wgp, lph = c["cin_p"], c["hph"], c["wgp"], c["lph"]
    ap = jnp.pad(a_nchw, ((0, 0), (0, cin_p - cin), (dp, dp), (dp, dp)))
    pieces = []
    for pr in range(ds):
        for qc in range(ds):
            g = ap[:, :, pr::ds, qc::ds]
            g = g[:, :, :hph, :wgp]
            pad_h, pad_w = hph - g.shape[2], wgp - g.shape[3]
            if pad_h or pad_w:
                g = jnp.pad(g, ((0, 0), (0, 0), (0, pad_h), (0, pad_w)))
            pieces.append(g)
    ph = jnp.concatenate(pieces, axis=1).reshape(n, ds * ds * cin_p, hph * wgp)
    tail = lph - hph * wgp
    if tail:
        ph = jnp.pad(ph, ((0, 0), (0, 0), (0, tail)))
    return ph.astype(_GEMM_DTYPE)


def _downsample_mask(c):
    """Valid-output mask over the downsample GEMM lanes (zeroes halo/garbage columns)."""
    idx = np.arange(c["ld"])
    m = ((idx % c["wgp"]) < c["wo"]) & (idx < c["ho"] * c["wgp"])
    return jnp.asarray(m, dtype=jnp.float32).reshape(1, c["ld"])


def _pack_hidden(h_nchw, c):
    """NCHW hidden -> guarded, zero-padded flattened layout (N, Ch, Le) f32."""
    n, ch, _, _ = h_nchw.shape
    gp = c["gp"]
    hp = jnp.pad(h_nchw.astype(jnp.float32), ((0, 0), (0, 0), (gp, gp), (gp, gp)))
    hf = hp.reshape(n, ch, c["l_img"])
    return jnp.pad(hf, ((0, 0), (0, 0), (c["guard"], c["le"] - c["guard"] - c["l_img"])))


def _unpack_newh(y, c):
    """(N, Ch, Lc) padded-flattened new_h -> NCHW (N, Ch, Ho, Wo)."""
    n, ch, _ = y.shape
    y = y[:, :, :c["l_img"]].reshape(n, ch, c["hgp"], c["wgp"])
    return y[:, :, c["gp"]:c["gp"] + c["ho"], c["gp"]:c["gp"] + c["wo"]]


# ----------------------------- parameter packing -----------------------------

def prepare_encoder_params(cells, dtype=_GEMM_DTYPE):
    """Pack raw per-cell (torch-layout) params into GEMM-ready channel-major weights ONCE."""
    packed, config = [], []
    for cell in cells:
        cx = cell["down_w"].shape[0]
        cin = cell["down_w"].shape[1]
        ch = cell["w_update"].shape[0]
        cin_p = _round_up(cin, 8)
        dw = cell["down_w"]
        if cin_p > cin:                     # pad input channels to a sublane multiple
            dw = jnp.pad(dw, ((0, 0), (0, cin_p - cin), (0, 0), (0, 0)))
        wux, wuh = cell["w_update"][:, :cx], cell["w_update"][:, cx:]
        wrx, wrh = cell["w_reset"][:, :cx], cell["w_reset"][:, cx:]
        wox, woh = cell["w_out"][:, :cx], cell["w_out"][:, cx:]
        packed.append(dict(
            wd=_pack_w(dw).astype(dtype),                                         # (Cx, dk*dk*Cin_p)
            bd=cell["down_b"].reshape(-1, 1).astype(jnp.float32),                 # (Cx, 1)
            wx3=jnp.concatenate([_pack_w(wux), _pack_w(wrx), _pack_w(wox)],
                                axis=0).astype(dtype),                            # (3Ch, gk*gk*Cx)
            bx3=jnp.concatenate([cell["b_update"], cell["b_reset"], cell["b_out"]]
                                ).reshape(-1, 1).astype(jnp.float32),
            wx2=jnp.concatenate([_pack_w(wux), _pack_w(wox)],
                                axis=0).astype(dtype),                            # zero-h path
            bx2=jnp.concatenate([cell["b_update"], cell["b_out"]]
                                ).reshape(-1, 1).astype(jnp.float32),
            whur=jnp.concatenate([_pack_w(wuh), _pack_w(wrh)], axis=0).astype(dtype),
            who=_pack_w(woh).astype(dtype),
        ))
        config.append((int(cell["down_k"]), int(cell["down_s"]), int(cell["down_p"]),
                       int(cell["gru_k"]), int(cell["gru_s"]), int(cell["gru_p"]),
                       int(cin), int(cx), int(ch)))
    return tuple(packed), tuple(config)


# ----------------------------- Encoder forward -----------------------------

@functools.partial(jax.jit, static_argnames=("config",))
def encoder_forward(x_nchw, params, hidden, *, config):
    """Pallas Encoder forward (NCHW in / list of NCHW updated hiddens out)."""
    if hidden is None:
        hidden = (None,) * len(params)
    a = x_nchw.astype(jnp.float32)
    n = a.shape[0]
    upd_hidden = []
    for p, cfg, h_prev in zip(params, config, hidden):
        c = _derive_cell(cfg, a.shape[2], a.shape[3])
        ph = _phase_decompose(a, c)
        dmask = _downsample_mask(c)
        if h_prev is None:
            newh = _cell_zeroh_call(ph, dmask, p, c, n)
        else:
            h_ext = _pack_hidden(h_prev, c)
            newh = _cell_call(ph, h_ext, dmask, p, c, n)
        a = _unpack_newh(newh, c)                      # NCHW, feeds the next cell
        upd_hidden.append(a)
    return upd_hidden


# ----------------------------- pure-JAX references (for checking) -----------------------------

def _conv2d_ref(x_nchw, w_oihw, b, stride, pad, mixed):
    if mixed:
        x_nchw = x_nchw.astype(jnp.bfloat16)
        w_oihw = w_oihw.astype(jnp.bfloat16)
    out = jax.lax.conv_general_dilated(
        x_nchw, w_oihw, window_strides=(stride, stride),
        padding=[(pad, pad), (pad, pad)],
        dimension_numbers=("NCHW", "OIHW", "NCHW"),
        preferred_element_type=jnp.float32)
    return out + b.reshape(1, -1, 1, 1)


def encoder_forward_ref(x, cells, hidden=None, mixed=False):
    """Reference matching the PyTorch module.  mixed=True mirrors the kernel's bf16 MXU inputs."""
    if hidden is None:
        hidden = [None] * len(cells)
    input_ = x
    upd = []
    for cell, h0 in zip(cells, hidden):
        y = _conv2d_ref(input_, cell["down_w"], cell["down_b"],
                        cell["down_s"], cell["down_p"], mixed)
        y = jnp.where(y >= 0, y, 0.2 * y)          # LeakyReLU(0.2)
        n, _, hh, ww = y.shape
        ch = cell["w_update"].shape[0]
        h = jnp.zeros((n, ch, hh, ww), jnp.float32) if h0 is None else h0.astype(jnp.float32)
        stacked = jnp.concatenate([y, h], axis=1)
        u = jax.nn.sigmoid(_conv2d_ref(stacked, cell["w_update"], cell["b_update"],
                                       cell["gru_s"], cell["gru_p"], mixed))
        r = jax.nn.sigmoid(_conv2d_ref(stacked, cell["w_reset"], cell["b_reset"],
                                       cell["gru_s"], cell["gru_p"], mixed))
        o = jnp.tanh(_conv2d_ref(jnp.concatenate([y, r * h], axis=1),
                                 cell["w_out"], cell["b_out"],
                                 cell["gru_s"], cell["gru_p"], mixed))
        new_h = h * (1.0 - u) + o * u
        upd.append(new_h)
        input_ = new_h
    return upd


# ----------------------------- deterministic parameter init -----------------------------

def _conv_params(key, cout, cin, k):
    """PyTorch-style uniform(-1/sqrt(fan_in), 1/sqrt(fan_in)) init."""
    kw_, kb_ = jax.random.split(key)
    fan_in = cin * k * k
    bound = 1.0 / (fan_in ** 0.5)
    w = jax.random.uniform(kw_, (cout, cin, k, k), jnp.float32, -bound, bound)
    b = jax.random.uniform(kb_, (cout,), jnp.float32, -bound, bound)
    return w, b


def build_encoder_params(key, channel_input, downsample_c, downsample_k, downsample_s,
                         downsample_p, gru_c, gru_k, gru_s, gru_p):
    cells = []
    in_c = channel_input
    for i in range(len(downsample_c)):
        keys = jax.random.split(jax.random.fold_in(key, i), 4)
        dw, db = _conv_params(keys[0], downsample_c[i], in_c, downsample_k[i])
        gin = downsample_c[i] + gru_c[i]
        wu, bu = _conv_params(keys[1], gru_c[i], gin, gru_k[i])
        wr, br = _conv_params(keys[2], gru_c[i], gin, gru_k[i])
        wo, bo = _conv_params(keys[3], gru_c[i], gin, gru_k[i])
        cells.append(dict(
            down_w=dw, down_b=db, down_k=downsample_k[i], down_s=downsample_s[i],
            down_p=downsample_p[i],
            w_update=wu, b_update=bu, w_reset=wr, b_reset=br, w_out=wo, b_out=bo,
            gru_k=gru_k[i], gru_s=gru_s[i], gru_p=gru_p[i]))
        in_c = gru_c[i]
    return cells


# ----------------------------- main -----------------------------

if __name__ == "__main__":
    key = jax.random.PRNGKey(0)
    kx, kp, kh = jax.random.split(key, 3)

    # Encoder(channel_input=4, downsample_c=[8,16], downsample_k=4, downsample_s=2,
    #         downsample_p=1, gru_c=[8,16], gru_k=3, gru_s=1, gru_p=1)
    channel_input = 4
    downsample_c, downsample_k = [8, 16], [4, 4]
    downsample_s, downsample_p = [2, 2], [1, 1]
    gru_c, gru_k, gru_s, gru_p = [8, 16], [3, 3], [1, 1], [1, 1]

    x = jax.random.normal(kx, (2, channel_input, 16, 16), jnp.float32)  # NCHW
    cells = build_encoder_params(kp, channel_input, downsample_c, downsample_k,
                                 downsample_s, downsample_p, gru_c, gru_k, gru_s, gru_p)
    params, config = prepare_encoder_params(cells)

    def check(pallas_out, hidden_in):
        ref_mixed = encoder_forward_ref(x, cells, hidden_in, mixed=True)   # same bf16 MXU inputs
        ref_f32 = encoder_forward_ref(x, cells, hidden_in, mixed=False)    # pure f32 reference
        for h_pal, h_m, h_f in zip(pallas_out, ref_mixed, ref_f32):
            assert h_pal.shape == h_m.shape, (h_pal.shape, h_m.shape)
            assert jnp.allclose(h_pal, h_m, atol=1e-2, rtol=1e-2), \
                float(jnp.max(jnp.abs(h_pal - h_m)))
            assert jnp.allclose(h_pal, h_f, atol=6e-2, rtol=6e-2), \
                float(jnp.max(jnp.abs(h_pal - h_f)))

    # Run 1: no previous hidden (zero hidden -> collapsed single-GEMM GRU path)
    upd_hidden = encoder_forward(x, params, None, config=config)
    upd_hidden = [jax.block_until_ready(h) for h in upd_hidden]
    check(upd_hidden, None)

    # Run 2: nonzero previous hidden (exercises the gate + r*h + out-conv path)
    hidden_in = [
        0.5 * jax.random.normal(jax.random.fold_in(kh, i),
                                (2, gru_c[i], 16 // (2 ** (i + 1)), 16 // (2 ** (i + 1))),
                                jnp.float32)
        for i in range(len(gru_c))
    ]
    upd_hidden2 = encoder_forward(x, params, tuple(hidden_in), config=config)
    upd_hidden2 = [jax.block_until_ready(h) for h in upd_hidden2]
    check(upd_hidden2, hidden_in)

    print("KERNEL_OK")
</pallas_src>

<mosaic_0001>
module attributes {stable_mosaic.version = 11 : i64} {
  func.func @_cell_zeroh_kernel(%arg0: i32, %arg1: memref<1x32x256xbf16, #tpu.memory_space<vmem>>, %arg2: memref<1x128xf32, #tpu.memory_space<vmem>>, %arg3: memref<8x128xbf16, #tpu.memory_space<vmem>>, %arg4: memref<8x1xf32, #tpu.memory_space<vmem>>, %arg5: memref<16x72xbf16, #tpu.memory_space<vmem>>, %arg6: memref<16x1xf32, #tpu.memory_space<vmem>>, %arg7: memref<1x8x128xf32, #tpu.memory_space<vmem>>, %arg8: memref<8x256xbf16, #tpu.memory_space<vmem>>, %arg9: memref<128x128xbf16, #tpu.memory_space<vmem>>, %arg10: memref<72x128xbf16, #tpu.memory_space<vmem>>) attributes {dimension_semantics = [#tpu.dimension_semantics<parallel>], iteration_bounds = array<i64: 2>, scalar_prefetch = 0 : i64, scratch_operands = 3 : i64, tpu.core_type = #tpu.core_type<tc>, window_params = [{transform_indices = @transform_0, window_bounds = array<i64: 1, 32, 256>}, {pipeline_mode = #tpu.pipeline_mode<synchronous>, transform_indices = @transform_1, window_bounds = array<i64: 1, 128>}, {pipeline_mode = #tpu.pipeline_mode<synchronous>, transform_indices = @transform_2, window_bounds = array<i64: 8, 128>}, {pipeline_mode = #tpu.pipeline_mode<synchronous>, transform_indices = @transform_3, window_bounds = array<i64: 8, 1>}, {pipeline_mode = #tpu.pipeline_mode<synchronous>, transform_indices = @transform_4, window_bounds = array<i64: 16, 72>}, {pipeline_mode = #tpu.pipeline_mode<synchronous>, transform_indices = @transform_5, window_bounds = array<i64: 16, 1>}, {transform_indices = @transform_6, window_bounds = array<i64: 1, 8, 128>}]} {
    %c0 = arith.constant 0 : index
    %c0_0 = arith.constant 0 : index
    %c0_1 = arith.constant 0 : index
    %0 = vector.load %arg1[%c0, %c0_0, %c0_1] : memref<1x32x256xbf16, #tpu.memory_space<vmem>>, vector<1x8x128xbf16>
    %1 = vector.shape_cast %0 : vector<1x8x128xbf16> to vector<8x128xbf16>
    %c0_2 = arith.constant 0 : index
    %c0_3 = arith.constant 0 : index
    %2 = vector.load %arg9[%c0_2, %c0_3] : memref<128x128xbf16, #tpu.memory_space<vmem>>, vector<8x128xbf16>
    tpu.vector_store %arg9[%c0_2, %c0_3], %1 {strides = array<i32>} : memref<128x128xbf16, #tpu.memory_space<vmem>>, vector<8x128xbf16>,
    %c0_4 = arith.constant 0 : index
    %c8 = arith.constant 8 : index
    %c0_5 = arith.constant 0 : index
    %3 = vector.load %arg1[%c0_4, %c8, %c0_5] : memref<1x32x256xbf16, #tpu.memory_space<vmem>>, vector<1x8x128xbf16>
    %4 = vector.shape_cast %3 : vector<1x8x128xbf16> to vector<8x128xbf16>
    %c8_6 = arith.constant 8 : index
    %c0_7 = arith.constant 0 : index
    %5 = vector.load %arg9[%c8_6, %c0_7] : memref<128x128xbf16, #tpu.memory_space<vmem>>, vector<8x128xbf16>
    tpu.vector_store %arg9[%c8_6, %c0_7], %4 {strides = array<i32>} : memref<128x128xbf16, #tpu.memory_space<vmem>>, vector<8x128xbf16>,
    %c0_8 = arith.constant 0 : index
    %c0_9 = arith.constant 0 : index
    %c1 = arith.constant 1 : index
    %6 = vector.load %arg1[%c0_8, %c0_9, %c1] : memref<1x32x256xbf16, #tpu.memory_space<vmem>>, vector<1x8x128xbf16>
    %7 = vector.shape_cast %6 : vector<1x8x128xbf16> to vector<8x128xbf16>
    %c16 = arith.constant 16 : index
    %c0_10 = arith.constant 0 : index
    %8 = vector.load %arg9[%c16, %c0_10] : memref<128x128xbf16, #tpu.memory_space<vmem>>, vector<8x128xbf16>
    tpu.vector_store %arg9[%c16, %c0_10], %7 {strides = array<i32>} : memref<128x128xbf16, #tpu.memory_space<vmem>>, vector<8x128xbf16>,
    %c0_11 = arith.constant 0 : index
    %c8_12 = arith.constant 8 : index
    %c1_13 = arith.constant 1 : index
    %9 = vector.load %arg1[%c0_11, %c8_12, %c1_13] : memref<1x32x256xbf16, #tpu.memory_space<vmem>>, vector<1x8x128xbf16>
    %10 = vector.shape_cast %9 : vector<1x8x128xbf16> to vector<8x128xbf16>
    %c24 = arith.constant 24 : index
    %c0_14 = arith.constant 0 : index
    %11 = vector.load %arg9[%c24, %c0_14] : memref<128x128xbf16, #tpu.memory_space<vmem>>, vector<8x128xbf16>
    tpu.vector_store %arg9[%c24, %c0_14], %10 {strides = array<i32>} : memref<128x128xbf16, #tpu.memory_space<vmem>>, vector<8x128xbf16>,
    %c0_15 = arith.constant 0 : index
    %c16_16 = arith.constant 16 : index
    %c0_17 = arith.constant 0 : index
    %12 = vector.load %arg1[%c0_15, %c16_16, %c0_17] : memref<1x32x256xbf16, #tpu.memory_space<vmem>>, vector<1x8x128xbf16>
    %13 = vector.shape_cast %12 : vector<1x8x128xbf16> to vector<8x128xbf16>
    %c32 = arith.constant 32 : index
    %c0_18 = arith.constant 0 : index
    %14 = vector.load %arg9[%c32, %c0_18] : memref<128x128xbf16, #tpu.memory_space<vmem>>, vector<8x128xbf16>
    tpu.vector_store %arg9[%c32, %c0_18], %13 {strides = array<i32>} : memref<128x128xbf16, #tpu.memory_space<vmem>>, vector<8x128xbf16>,
    %c0_19 = arith.constant 0 : index
    %c24_20 = arith.constant 24 : index
    %c0_21 = arith.constant 0 : index
    %15 = vector.load %arg1[%c0_19, %c24_20, %c0_21] : memref<1x32x256xbf16, #tpu.memory_space<vmem>>, vector<1x8x128xbf16>
    %16 = vector.shape_cast %15 : vector<1x8x128xbf16> to vector<8x128xbf16>
    %c40 = arith.constant 40 : index
    %c0_22 = arith.constant 0 : index
    %17 = vector.load %arg9[%c40, %c0_22] : memref<128x128xbf16, #tpu.memory_space<vmem>>, vector<8x128xbf16>
    tpu.vector_store %arg9[%c40, %c0_22], %16 {strides = array<i32>} : memref<128x128xbf16, #tpu.memory_space<vmem>>, vector<8x128xbf16>,
    %c0_23 = arith.constant 0 : index
    %c16_24 = arith.constant 16 : index
    %c1_25 = arith.constant 1 : index
    %18 = vector.load %arg1[%c0_23, %c16_24, %c1_25] : memref<1x32x256xbf16, #tpu.memory_space<vmem>>, vector<1x8x128xbf16>
    %19 = vector.shape_cast %18 : vector<1x8x128xbf16> to vector<8x128xbf16>
    %c48 = arith.constant 48 : index
    %c0_26 = arith.constant 0 : index
    %20 = vector.load %arg9[%c48, %c0_26] : memref<128x128xbf16, #tpu.memory_space<vmem>>, vector<8x128xbf16>
    tpu.vector_store %arg9[%c48, %c0_26], %19 {strides = array<i32>} : memref<128x128xbf16, #tpu.memory_space<vmem>>, vector<8x128xbf16>,
    %c0_27 = arith.constant 0 : index
    %c24_28 = arith.constant 24 : index
    %c1_29 = arith.constant 1 : index
    %21 = vector.load %arg1[%c0_27, %c24_28, %c1_29] : memref<1x32x256xbf16, #tpu.memory_space<vmem>>, vector<1x8x128xbf16>
    %22 = vector.shape_cast %21 : vector<1x8x128xbf16> to vector<8x128xbf16>
    %c56 = arith.constant 56 : index
    %c0_30 = arith.constant 0 : index
    %23 = vector.load %arg9[%c56, %c0_30] : memref<128x128xbf16, #tpu.memory_space<vmem>>, vector<8x128xbf16>
    tpu.vector_store %arg9[%c56, %c0_30], %22 {strides = array<i32>} : memref<128x128xbf16, #tpu.memory_space<vmem>>, vector<8x128xbf16>,
    %c0_31 = arith.constant 0 : index
    %c0_32 = arith.constant 0 : index
    %c10 = arith.constant 10 : index
    %24 = vector.load %arg1[%c0_31, %c0_32, %c10] : memref<1x32x256xbf16, #tpu.memory_space<vmem>>, vector<1x8x128xbf16>
    %25 = vector.shape_cast %24 : vector<1x8x128xbf16> to vector<8x128xbf16>
    %c64 = arith.constant 64 : index
    %c0_33 = arith.constant 0 : index
    %26 = vector.load %arg9[%c64, %c0_33] : memref<128x128xbf16, #tpu.memory_space<vmem>>, vector<8x128xbf16>
    tpu.vector_store %arg9[%c64, %c0_33], %25 {strides = array<i32>} : memref<128x128xbf16, #tpu.memory_space<vmem>>, vector<8x128xbf16>,
    %c0_34 = arith.constant 0 : index
    %c8_35 = arith.constant 8 : index
    %c10_36 = arith.constant 10 : index
    %27 = vector.load %arg1[%c0_34, %c8_35, %c10_36] : memref<1x32x256xbf16, #tpu.memory_space<vmem>>, vector<1x8x128xbf16>
    %28 = vector.shape_cast %27 : vector<1x8x128xbf16> to vector<8x128xbf16>
    %c72 = arith.constant 72 : index
    %c0_37 = arith.constant 0 : index
    %29 = vector.load %arg9[%c72, %c0_37] : memref<128x128xbf16, #tpu.memory_space<vmem>>, vector<8x128xbf16>
    tpu.vector_store %arg9[%c72, %c0_37], %28 {strides = array<i32>} : memref<128x128xbf16, #tpu.memory_space<vmem>>, vector<8x128xbf16>,
    %c0_38 = arith.constant 0 : index
    %c0_39 = arith.constant 0 : index
    %c11 = arith.constant 11 : index
    %30 = vector.load %arg1[%c0_38, %c0_39, %c11] : memref<1x32x256xbf16, #tpu.memory_space<vmem>>, vector<1x8x128xbf16>
    %31 = vector.shape_cast %30 : vector<1x8x128xbf16> to vector<8x128xbf16>
    %c80 = arith.constant 80 : index
    %c0_40 = arith.constant 0 : index
    %32 = vector.load %arg9[%c80, %c0_40] : memref<128x128xbf16, #tpu.memory_space<vmem>>, vector<8x128xbf16>
    tpu.vector_store %arg9[%c80, %c0_40], %31 {strides = array<i32>} : memref<128x128xbf16, #tpu.memory_space<vmem>>, vector<8x128xbf16>,
    %c0_41 = arith.constant 0 : index
    %c8_42 = arith.constant 8 : index
    %c11_43 = arith.constant 11 : index
    %33 = vector.load %arg1[%c0_41, %c8_42, %c11_43] : memref<1x32x256xbf16, #tpu.memory_space<vmem>>, vector<1x8x128xbf16>
    %34 = vector.shape_cast %33 : vector<1x8x128xbf16> to vector<8x128xbf16>
    %c88 = arith.constant 88 : index
    %c0_44 = arith.constant 0 : index
    %35 = vector.load %arg9[%c88, %c0_44] : memref<128x128xbf16, #tpu.memory_space<vmem>>, vector<8x128xbf16>
    tpu.vector_store %arg9[%c88, %c0_44], %34 {strides = array<i32>} : memref<128x128xbf16, #tpu.memory_space<vmem>>, vector<8x128xbf16>,
    %c0_45 = arith.constant 0 : index
    %c16_46 = arith.constant 16 : index
    %c10_47 = arith.constant 10 : index
    %36 = vector.load %arg1[%c0_45, %c16_46, %c10_47] : memref<1x32x256xbf16, #tpu.memory_space<vmem>>, vector<1x8x128xbf16>
    %37 = vector.shape_cast %36 : vector<1x8x128xbf16> to vector<8x128xbf16>
    %c96 = arith.constant 96 : index
    %c0_48 = arith.constant 0 : index
    %38 = vector.load %arg9[%c96, %c0_48] : memref<128x128xbf16, #tpu.memory_space<vmem>>, vector<8x128xbf16>
    tpu.vector_store %arg9[%c96, %c0_48], %37 {strides = array<i32>} : memref<128x128xbf16, #tpu.memory_space<vmem>>, vector<8x128xbf16>,
    %c0_49 = arith.constant 0 : index
    %c24_50 = arith.constant 24 : index
    %c10_51 = arith.constant 10 : index
    %39 = vector.load %arg1[%c0_49, %c24_50, %c10_51] : memref<1x32x256xbf16, #tpu.memory_space<vmem>>, vector<1x8x128xbf16>
    %40 = vector.shape_cast %39 : vector<1x8x128xbf16> to vector<8x128xbf16>
    %c104 = arith.constant 104 : index
    %c0_52 = arith.constant 0 : index
    %41 = vector.load %arg9[%c104, %c0_52] : memref<128x128xbf16, #tpu.memory_space<vmem>>, vector<8x128xbf16>
    tpu.vector_store %arg9[%c104, %c0_52], %40 {strides = array<i32>} : memref<128x128xbf16, #tpu.memory_space<vmem>>, vector<8x128xbf16>,
    %c0_53 = arith.constant 0 : index
    %c16_54 = arith.constant 16 : index
    %c11_55 = arith.constant 11 : index
    %42 = vector.load %arg1[%c0_53, %c16_54, %c11_55] : memref<1x32x256xbf16, #tpu.memory_space<vmem>>, vector<1x8x128xbf16>
    %43 = vector.shape_cast %42 : vector<1x8x128xbf16> to vector<8x128xbf16>
    %c112 = arith.constant 112 : index
    %c0_56 = arith.constant 0 : index
    %44 = vector.load %arg9[%c112, %c0_56] : memref<128x128xbf16, #tpu.memory_space<vmem>>, vector<8x128xbf16>
    tpu.vector_store %arg9[%c112, %c0_56], %43 {strides = array<i32>} : memref<128x128xbf16, #tpu.memory_space<vmem>>, vector<8x128xbf16>,
    %c0_57 = arith.constant 0 : index
    %c24_58 = arith.constant 24 : index
    %c11_59 = arith.constant 11 : index
    %45 = vector.load %arg1[%c0_57, %c24_58, %c11_59] : memref<1x32x256xbf16, #tpu.memory_space<vmem>>, vector<1x8x128xbf16>
    %46 = vector.shape_cast %45 : vector<1x8x128xbf16> to vector<8x128xbf16>
    %c120 = arith.constant 120 : index
    %c0_60 = arith.constant 0 : index
    %47 = vector.load %arg9[%c120, %c0_60] : memref<128x128xbf16, #tpu.memory_space<vmem>>, vector<8x128xbf16>
    tpu.vector_store %arg9[%c120, %c0_60], %46 {strides = array<i32>} : memref<128x128xbf16, #tpu.memory_space<vmem>>, vector<8x128xbf16>,
    %c0_61 = arith.constant 0 : index
    %c0_62 = arith.constant 0 : index
    %48 = vector.load %arg3[%c0_61, %c0_62] : memref<8x128xbf16, #tpu.memory_space<vmem>>, vector<8x128xbf16>
    %c0_63 = arith.constant 0 : index
    %c0_64 = arith.constant 0 : index
    %49 = vector.load %arg9[%c0_63, %c0_64] : memref<128x128xbf16, #tpu.memory_space<vmem>>, vector<128x128xbf16>
    %cst = arith.constant dense<0.000000e+00> : vector<8x128xf32>
    %50 = tpu.matmul %48, %49, %cst {dimension_numbers = #tpu.dot_dimension_numbers<[1], [0], [0], [1], [0, 0, 1, 1], [], []>} : vector<8x128xbf16>, vector<128x128xbf16>, vector<8x128xf32> -> vector<8x128xf32>
    %c0_65 = arith.constant 0 : index
    %c0_66 = arith.constant 0 : index
    %51 = vector.load %arg4[%c0_65, %c0_66] : memref<8x1xf32, #tpu.memory_space<vmem>>, vector<8x1xf32>
    %52 = vector.broadcast %51 : vector<8x1xf32> to vector<8x128xf32>
    %53 = arith.addf %50, %52 : vector<8x128xf32>
    %cst_67 = arith.constant 0.000000e+00 : f32
    %54 = vector.broadcast %cst_67 : f32 to vector<8x128xf32>
    %55 = arith.cmpf oge, %53, %54 : vector<8x128xf32>
    %cst_68 = arith.constant 2.000000e-01 : f32
    %56 = vector.broadcast %cst_68 : f32 to vector<8x128xf32>
    %57 = arith.mulf %56, %53 : vector<8x128xf32>
    %58 = arith.select %55, %53, %57 : vector<8x128xi1>, vector<8x128xf32>
    %c0_69 = arith.constant 0 : index
    %c0_70 = arith.constant 0 : index
    %59 = vector.load %arg2[%c0_69, %c0_70] : memref<1x128xf32, #tpu.memory_space<vmem>>, vector<1x128xf32>
    %60 = vector.broadcast %59 : vector<1x128xf32> to vector<8x128xf32>
    %61 = arith.mulf %58, %60 : vector<8x128xf32>
    %cst_71 = arith.constant 0.000000e+00 : bf16
    %62 = vector.broadcast %cst_71 : bf16 to vector<8x256xbf16>
    %c0_72 = arith.constant 0 : index
    %c0_73 = arith.constant 0 : index
    %63 = vector.load %arg8[%c0_72, %c0_73] : memref<8x256xbf16, #tpu.memory_space<vmem>>, vector<8x256xbf16>
    tpu.vector_store %arg8[%c0_72, %c0_73], %62 {strides = array<i32>} : memref<8x256xbf16, #tpu.memory_space<vmem>>, vector<8x256xbf16>,
    %64 = arith.truncf %61 : vector<8x128xf32> to vector<8x128xbf16>
    %c0_74 = arith.constant 0 : index
    %c22 = arith.constant 22 : index
    %65 = vector.load %arg8[%c0_74, %c22] : memref<8x256xbf16, #tpu.memory_space<vmem>>, vector<8x128xbf16>
    tpu.vector_store %arg8[%c0_74, %c22], %64 {strides = array<i32>} : memref<8x256xbf16, #tpu.memory_space<vmem>>, vector<8x128xbf16>,
    %c0_75 = arith.constant 0 : index
    %c0_76 = arith.constant 0 : index
    %66 = vector.load %arg8[%c0_75, %c0_76] : memref<8x256xbf16, #tpu.memory_space<vmem>>, vector<8x128xbf16>
    %c0_77 = arith.constant 0 : index
    %c0_78 = arith.constant 0 : index
    %67 = vector.load %arg10[%c0_77, %c0_78] : memref<72x128xbf16, #tpu.memory_space<vmem>>, vector<8x128xbf16>
    tpu.vector_store %arg10[%c0_77, %c0_78], %66 {strides = array<i32>} : memref<72x128xbf16, #tpu.memory_space<vmem>>, vector<8x128xbf16>,
    %c0_79 = arith.constant 0 : index
    %c1_80 = arith.constant 1 : index
    %68 = vector.load %arg8[%c0_79, %c1_80] : memref<8x256xbf16, #tpu.memory_space<vmem>>, vector<8x128xbf16>
    %c8_81 = arith.constant 8 : index
    %c0_82 = arith.constant 0 : index
    %69 = vector.load %arg10[%c8_81, %c0_82] : memref<72x128xbf16, #tpu.memory_space<vmem>>, vector<8x128xbf16>
    tpu.vector_store %arg10[%c8_81, %c0_82], %68 {strides = array<i32>} : memref<72x128xbf16, #tpu.memory_space<vmem>>, vector<8x128xbf16>,
    %c0_83 = arith.constant 0 : index
    %c2 = arith.constant 2 : index
    %70 = vector.load %arg8[%c0_83, %c2] : memref<8x256xbf16, #tpu.memory_space<vmem>>, vector<8x128xbf16>
    %c16_84 = arith.constant 16 : index
    %c0_85 = arith.constant 0 : index
    %71 = vector.load %arg10[%c16_84, %c0_85] : memref<72x128xbf16, #tpu.memory_space<vmem>>, vector<8x128xbf16>
    tpu.vector_store %arg10[%c16_84, %c0_85], %70 {strides = array<i32>} : memref<72x128xbf16, #tpu.memory_space<vmem>>, vector<8x128xbf16>,
    %c0_86 = arith.constant 0 : index
    %c10_87 = arith.constant 10 : index
    %72 = vector.load %arg8[%c0_86, %c10_87] : memref<8x256xbf16, #tpu.memory_space<vmem>>, vector<8x128xbf16>
    %c24_88 = arith.constant 24 : index
    %c0_89 = arith.constant 0 : index
    %73 = vector.load %arg10[%c24_88, %c0_89] : memref<72x128xbf16, #tpu.memory_space<vmem>>, vector<8x128xbf16>
    tpu.vector_store %arg10[%c24_88, %c0_89], %72 {strides = array<i32>} : memref<72x128xbf16, #tpu.memory_space<vmem>>, vector<8x128xbf16>,
    %c0_90 = arith.constant 0 : index
    %c11_91 = arith.constant 11 : index
    %74 = vector.load %arg8[%c0_90, %c11_91] : memref<8x256xbf16, #tpu.memory_space<vmem>>, vector<8x128xbf16>
    %c32_92 = arith.constant 32 : index
    %c0_93 = arith.constant 0 : index
    %75 = vector.load %arg10[%c32_92, %c0_93] : memref<72x128xbf16, #tpu.memory_space<vmem>>, vector<8x128xbf16>
    tpu.vector_store %arg10[%c32_92, %c0_93], %74 {strides = array<i32>} : memref<72x128xbf16, #tpu.memory_space<vmem>>, vector<8x128xbf16>,
    %c0_94 = arith.constant 0 : index
    %c12 = arith.constant 12 : index
    %76 = vector.load %arg8[%c0_94, %c12] : memref<8x256xbf16, #tpu.memory_space<vmem>>, vector<8x128xbf16>
    %c40_95 = arith.constant 40 : index
    %c0_96 = arith.constant 0 : index
    %77 = vector.load %arg10[%c40_95, %c0_96] : memref<72x128xbf16, #tpu.memory_space<vmem>>, vector<8x128xbf16>
    tpu.vector_store %arg10[%c40_95, %c0_96], %76 {strides = array<i32>} : memref<72x128xbf16, #tpu.memory_space<vmem>>, vector<8x128xbf16>,
    %c0_97 = arith.constant 0 : index
    %c20 = arith.constant 20 : index
    %78 = vector.load %arg8[%c0_97, %c20] : memref<8x256xbf16, #tpu.memory_space<vmem>>, vector<8x128xbf16>
    %c48_98 = arith.constant 48 : index
    %c0_99 = arith.constant 0 : index
    %79 = vector.load %arg10[%c48_98, %c0_99] : memref<72x128xbf16, #tpu.memory_space<vmem>>, vector<8x128xbf16>
    tpu.vector_store %arg10[%c48_98, %c0_99], %78 {strides = array<i32>} : memref<72x128xbf16, #tpu.memory_space<vmem>>, vector<8x128xbf16>,
    %c0_100 = arith.constant 0 : index
    %c21 = arith.constant 21 : index
    %80 = vector.load %arg8[%c0_100, %c21] : memref<8x256xbf16, #tpu.memory_space<vmem>>, vector<8x128xbf16>
    %c56_101 = arith.constant 56 : index
    %c0_102 = arith.constant 0 : index
    %81 = vector.load %arg10[%c56_101, %c0_102] : memref<72x128xbf16, #tpu.memory_space<vmem>>, vector<8x128xbf16>
    tpu.vector_store %arg10[%c56_101, %c0_102], %80 {strides = array<i32>} : memref<72x128xbf16, #tpu.memory_space<vmem>>, vector<8x128xbf16>,
    %c0_103 = arith.constant 0 : index
    %c22_104 = arith.constant 22 : index
    %82 = vector.load %arg8[%c0_103, %c22_104] : memref<8x256xbf16, #tpu.memory_space<vmem>>, vector<8x128xbf16>
    %c64_105 = arith.constant 64 : index
    %c0_106 = arith.constant 0 : index
    %83 = vector.load %arg10[%c64_105, %c0_106] : memref<72x128xbf16, #tpu.memory_space<vmem>>, vector<8x128xbf16>
    tpu.vector_store %arg10[%c64_105, %c0_106], %82 {strides = array<i32>} : memref<72x128xbf16, #tpu.memory_space<vmem>>, vector<8x128xbf16>,
    %c0_107 = arith.constant 0 : index
    %c0_108 = arith.constant 0 : index
    %84 = vector.load %arg5[%c0_107, %c0_108] : memref<16x72xbf16, #tpu.memory_space<vmem>>, vector<16x72xbf16>
    %c0_109 = arith.constant 0 : index
    %c0_110 = arith.constant 0 : index
    %85 = vector.load %arg10[%c0_109, %c0_110] : memref<72x128xbf16, #tpu.memory_space<vmem>>, vector<72x128xbf16>
    %cst_111 = arith.constant dense<0.000000e+00> : vector<16x128xf32>
    %86 = tpu.matmul %84, %85, %cst_111 {dimension_numbers = #tpu.dot_dimension_numbers<[1], [0], [0], [1], [0, 0, 1, 1], [], []>} : vector<16x72xbf16>, vector<72x128xbf16>, vector<16x128xf32> -> vector<16x128xf32>
    %c0_112 = arith.constant 0 : index
    %c0_113 = arith.constant 0 : index
    %87 = vector.load %arg6[%c0_112, %c0_113] : memref<16x1xf32, #tpu.memory_space<vmem>>, vector<16x1xf32>
    %88 = vector.broadcast %87 : vector<16x1xf32> to vector<16x128xf32>
    %89 = arith.addf %86, %88 : vector<16x128xf32>
    %90 = vector.extract_strided_slice %89 {offsets = [0, 0], sizes = [8, 128], strides = [1, 1]} : vector<16x128xf32> to vector<8x128xf32>
    %91 = arith.negf %90 : vector<8x128xf32>
    %92 = math.exp %91 : vector<8x128xf32>
    %cst_114 = arith.constant 1.000000e+00 : f32
    %93 = vector.broadcast %cst_114 : f32 to vector<8x128xf32>
    %94 = arith.addf %93, %92 : vector<8x128xf32>
    %95 = arith.divf %93, %94 : vector<8x128xf32>
    %96 = vector.extract_strided_slice %89 {offsets = [8, 0], sizes = [8, 128], strides = [1, 1]} : vector<16x128xf32> to vector<8x128xf32>
    %97 = math.tanh %96 : vector<8x128xf32>
    %98 = arith.mulf %97, %95 : vector<8x128xf32>
    %c0_115 = arith.constant 0 : index
    %c0_116 = arith.constant 0 : index
    %c0_117 = arith.constant 0 : index
    %99 = vector.load %arg7[%c0_115, %c0_116, %c0_117] : memref<1x8x128xf32, #tpu.memory_space<vmem>>, vector<1x8x128xf32>
    %100 = vector.shape_cast %99 : vector<1x8x128xf32> to vector<8x128xf32>
    %101 = vector.shape_cast %98 : vector<8x128xf32> to vector<1x8x128xf32>
    tpu.vector_store %arg7[%c0_115, %c0_116, %c0_117], %101 {strides = array<i32>} : memref<1x8x128xf32, #tpu.memory_space<vmem>>, vector<1x8x128xf32>,
    return
  }
  func.func @transform_0(%arg0: i32) -> (i32, i32, i32) {
    %c0_i32 = arith.constant 0 : i32
    %c0_i32_0 = arith.constant 0 : i32
    %c0_i32_1 = arith.constant 0 : i32
    return %arg0, %c0_i32, %c0_i32_0 : i32, i32, i32
  }
  func.func @transform_1(%arg0: i32) -> (i32, i32) {
    %c0_i32 = arith.constant 0 : i32
    %c0_i32_0 = arith.constant 0 : i32
    %c0_i32_1 = arith.constant 0 : i32
    return %c0_i32, %c0_i32_0 : i32, i32
  }
  func.func @transform_2(%arg0: i32) -> (i32, i32) {
    %c0_i32 = arith.constant 0 : i32
    %c0_i32_0 = arith.constant 0 : i32
    %c0_i32_1 = arith.constant 0 : i32
    return %c0_i32, %c0_i32_0 : i32, i32
  }
  func.func @transform_3(%arg0: i32) -> (i32, i32) {
    %c0_i32 = arith.constant 0 : i32
    %c0_i32_0 = arith.constant 0 : i32
    %c0_i32_1 = arith.constant 0 : i32
    return %c0_i32, %c0_i32_0 : i32, i32
  }
  func.func @transform_4(%arg0: i32) -> (i32, i32) {
    %c0_i32 = arith.constant 0 : i32
    %c0_i32_0 = arith.constant 0 : i32
    %c0_i32_1 = arith.constant 0 : i32
    return %c0_i32, %c0_i32_0 : i32, i32
  }
  func.func @transform_5(%arg0: i32) -> (i32, i32) {
    %c0_i32 = arith.constant 0 : i32
    %c0_i32_0 = arith.constant 0 : i32
    %c0_i32_1 = arith.constant 0 : i32
    return %c0_i32, %c0_i32_0 : i32, i32
  }
  func.func @transform_6(%arg0: i32) -> (i32, i32, i32) {
    %c0_i32 = arith.constant 0 : i32
    %c0_i32_0 = arith.constant 0 : i32
    %c0_i32_1 = arith.constant 0 : i32
    return %arg0, %c0_i32, %c0_i32_0 : i32, i32, i32
  }
}

module attributes {stable_mosaic.version = 11 : i64} {
  func.func @_cell_zeroh_kernel(%arg0: i32, %arg1: memref<1x32x256xbf16, #tpu.memory_space<vmem>>, %arg2: memref<1x128xf32, #tpu.memory_space<vmem>>, %arg3: memref<16x128xbf16, #tpu.memory_space<vmem>>, %arg4: memref<16x1xf32, #tpu.memory_space<vmem>>, %arg5: memref<32x144xbf16, #tpu.memory_space<vmem>>, %arg6: memref<32x1xf32, #tpu.memory_space<vmem>>, %arg7: memref<1x16x128xf32, #tpu.memory_space<vmem>>, %arg8: memref<16x256xbf16, #tpu.memory_space<vmem>>, %arg9: memref<128x128xbf16, #tpu.memory_space<vmem>>, %arg10: memref<144x128xbf16, #tpu.memory_space<vmem>>) attributes {dimension_semantics = [#tpu.dimension_semantics<parallel>], iteration_bounds = array<i64: 2>, scalar_prefetch = 0 : i64, scratch_operands = 3 : i64, tpu.core_type = #tpu.core_type<tc>, window_params = [{transform_indices = @transform_0, window_bounds = array<i64: 1, 32, 256>}, {pipeline_mode = #tpu.pipeline_mode<synchronous>, transform_indices = @transform_1, window_bounds = array<i64: 1, 128>}, {pipeline_mode = #tpu.pipeline_mode<synchronous>, transform_indices = @transform_2, window_bounds = array<i64: 16, 128>}, {pipeline_mode = #tpu.pipeline_mode<synchronous>, transform_indices = @transform_3, window_bounds = array<i64: 16, 1>}, {pipeline_mode = #tpu.pipeline_mode<synchronous>, transform_indices = @transform_4, window_bounds = array<i64: 32, 144>}, {pipeline_mode = #tpu.pipeline_mode<synchronous>, transform_indices = @transform_5, window_bounds = array<i64: 32, 1>}, {transform_indices = @transform_6, window_bounds = array<i64: 1, 16, 128>}]} {
    %c0 = arith.constant 0 : index
    %c0_0 = arith.constant 0 : index
    %c0_1 = arith.constant 0 : index
    %0 = vector.load %arg1[%c0, %c0_0, %c0_1] : memref<1x32x256xbf16, #tpu.memory_space<vmem>>, vector<1x8x128xbf16>
    %1 = vector.shape_cast %0 : vector<1x8x128xbf16> to vector<8x128xbf16>
    %c0_2 = arith.constant 0 : index
    %c0_3 = arith.constant 0 : index
    %2 = vector.load %arg9[%c0_2, %c0_3] : memref<128x128xbf16, #tpu.memory_space<vmem>>, vector<8x128xbf16>
    tpu.vector_store %arg9[%c0_2, %c0_3], %1 {strides = array<i32>} : memref<128x128xbf16, #tpu.memory_space<vmem>>, vector<8x128xbf16>,
    %c0_4 = arith.constant 0 : index
    %c8 = arith.constant 8 : index
    %c0_5 = arith.constant 0 : index
    %3 = vector.load %arg1[%c0_4, %c8, %c0_5] : memref<1x32x256xbf16, #tpu.memory_space<vmem>>, vector<1x8x128xbf16>
    %4 = vector.shape_cast %3 : vector<1x8x128xbf16> to vector<8x128xbf16>
    %c8_6 = arith.constant 8 : index
    %c0_7 = arith.constant 0 : index
    %5 = vector.load %arg9[%c8_6, %c0_7] : memref<128x128xbf16, #tpu.memory_space<vmem>>, vector<8x128xbf16>
    tpu.vector_store %arg9[%c8_6, %c0_7], %4 {strides = array<i32>} : memref<128x128xbf16, #tpu.memory_space<vmem>>, vector<8x128xbf16>,
    %c0_8 = arith.constant 0 : index
    %c0_9 = arith.constant 0 : index
    %c1 = arith.constant 1 : index
    %6 = vector.load %arg1[%c0_8, %c0_9, %c1] : memref<1x32x256xbf16, #tpu.memory_space<vmem>>, vector<1x8x128xbf16>
    %7 = vector.shape_cast %6 : vector<1x8x128xbf16> to vector<8x128xbf16>
    %c16 = arith.constant 16 : index
    %c0_10 = arith.constant 0 : index
    %8 = vector.load %arg9[%c16, %c0_10] : memref<128x128xbf16, #tpu.memory_space<vmem>>, vector<8x128xbf16>
    tpu.vector_store %arg9[%c16, %c0_10], %7 {strides = array<i32>} : memref<128x128xbf16, #tpu.memory_space<vmem>>, vector<8x128xbf16>,
    %c0_11 = arith.constant 0 : index
    %c8_12 = arith.constant 8 : index
    %c1_13 = arith.constant 1 : index
    %9 = vector.load %arg1[%c0_11, %c8_12, %c1_13] : memref<1x32x256xbf16, #tpu.memory_space<vmem>>, vector<1x8x128xbf16>
    %10 = vector.shape_cast %9 : vector<1x8x128xbf16> to vector<8x128xbf16>
    %c24 = arith.constant 24 : index
    %c0_14 = arith.constant 0 : index
    %11 = vector.load %arg9[%c24, %c0_14] : memref<128x128xbf16, #tpu.memory_space<vmem>>, vector<8x128xbf16>
    tpu.vector_store %arg9[%c24, %c0_14], %10 {strides = array<i32>} : memref<128x128xbf16, #tpu.memory_space<vmem>>, vector<8x128xbf16>,
    %c0_15 = arith.constant 0 : index
    %c16_16 = arith.constant 16 : index
    %c0_17 = arith.constant 0 : index
    %12 = vector.load %arg1[%c0_15, %c16_16, %c0_17] : memref<1x32x256xbf16, #tpu.memory_space<vmem>>, vector<1x8x128xbf16>
    %13 = vector.shape_cast %12 : vector<1x8x128xbf16> to vector<8x128xbf16>
    %c32 = arith.constant 32 : index
    %c0_18 = arith.constant 0 : index
    %14 = vector.load %arg9[%c32, %c0_18] : memref<128x128xbf16, #tpu.memory_space<vmem>>, vector<8x128xbf16>
    tpu.vector_store %arg9[%c32, %c0_18], %13 {strides = array<i32>} : memref<128x128xbf16, #tpu.memory_space<vmem>>, vector<8x128xbf16>,
    %c0_19 = arith.constant 0 : index
    %c24_20 = arith.constant 24 : index
    %c0_21 = arith.constant 0 : index
    %15 = vector.load %arg1[%c0_19, %c24_20, %c0_21] : memref<1x32x256xbf16, #tpu.memory_space<vmem>>, vector<1x8x128xbf16>
    %16 = vector.shape_cast %15 : vector<1x8x128xbf16> to vector<8x128xbf16>
    %c40 = arith.constant 40 : index
    %c0_22 = arith.constant 0 : index
    %17 = vector.load %arg9[%c40, %c0_22] : memref<128x128xbf16, #tpu.memory_space<vmem>>, vector<8x128xbf16>
    tpu.vector_store %arg9[%c40, %c0_22], %16 {strides = array<i32>} : memref<128x128xbf16, #tpu.memory_space<vmem>>, vector<8x128xbf16>,
    %c0_23 = arith.constant 0 : index
    %c16_24 = arith.constant 16 : index
    %c1_25 = arith.constant 1 : index
    %18 = vector.load %arg1[%c0_23, %c16_24, %c1_25] : memref<1x32x256xbf16, #tpu.memory_space<vmem>>, vector<1x8x128xbf16>
    %19 = vector.shape_cast %18 : vector<1x8x128xbf16> to vector<8x128xbf16>
    %c48 = arith.constant 48 : index
    %c0_26 = arith.constant 0 : index
    %20 = vector.load %arg9[%c48, %c0_26] : memref<128x128xbf16, #tpu.memory_space<vmem>>, vector<8x128xbf16>
    tpu.vector_store %arg9[%c48, %c0_26], %19 {strides = array<i32>} : memref<128x128xbf16, #tpu.memory_space<vmem>>, vector<8x128xbf16>,
    %c0_27 = arith.constant 0 : index
    %c24_28 = arith.constant 24 : index
    %c1_29 = arith.constant 1 : index
    %21 = vector.load %arg1[%c0_27, %c24_28, %c1_29] : memref<1x32x256xbf16, #tpu.memory_space<vmem>>, vector<1x8x128xbf16>
    %22 = vector.shape_cast %21 : vector<1x8x128xbf16> to vector<8x128xbf16>
    %c56 = arith.constant 56 : index
    %c0_30 = arith.constant 0 : index
    %23 = vector.load %arg9[%c56, %c0_30] : memref<128x128xbf16, #tpu.memory_space<vmem>>, vector<8x128xbf16>
    tpu.vector_store %arg9[%c56, %c0_30], %22 {strides = array<i32>} : memref<128x128xbf16, #tpu.memory_space<vmem>>, vector<8x128xbf16>,
    %c0_31 = arith.constant 0 : index
    %c0_32 = arith.constant 0 : index
    %c6 = arith.constant 6 : index
    %24 = vector.load %arg1[%c0_31, %c0_32, %c6] : memref<1x32x256xbf16, #tpu.memory_space<vmem>>, vector<1x8x128xbf16>
    %25 = vector.shape_cast %24 : vector<1x8x128xbf16> to vector<8x128xbf16>
    %c64 = arith.constant 64 : index
    %c0_33 = arith.constant 0 : index
    %26 = vector.load %arg9[%c64, %c0_33] : memref<128x128xbf16, #tpu.memory_space<vmem>>, vector<8x128xbf16>
    tpu.vector_store %arg9[%c64, %c0_33], %25 {strides = array<i32>} : memref<128x128xbf16, #tpu.memory_space<vmem>>, vector<8x128xbf16>,
    %c0_34 = arith.constant 0 : index
    %c8_35 = arith.constant 8 : index
    %c6_36 = arith.constant 6 : index
    %27 = vector.load %arg1[%c0_34, %c8_35, %c6_36] : memref<1x32x256xbf16, #tpu.memory_space<vmem>>, vector<1x8x128xbf16>
    %28 = vector.shape_cast %27 : vector<1x8x128xbf16> to vector<8x128xbf16>
    %c72 = arith.constant 72 : index
    %c0_37 = arith.constant 0 : index
    %29 = vector.load %arg9[%c72, %c0_37] : memref<128x128xbf16, #tpu.memory_space<vmem>>, vector<8x128xbf16>
    tpu.vector_store %arg9[%c72, %c0_37], %28 {strides = array<i32>} : memref<128x128xbf16, #tpu.memory_space<vmem>>, vector<8x128xbf16>,
    %c0_38 = arith.constant 0 : index
    %c0_39 = arith.constant 0 : index
    %c7 = arith.constant 7 : index
    %30 = vector.load %arg1[%c0_38, %c0_39, %c7] : memref<1x32x256xbf16, #tpu.memory_space<vmem>>, vector<1x8x128xbf16>
    %31 = vector.shape_cast %30 : vector<1x8x128xbf16> to vector<8x128xbf16>
    %c80 = arith.constant 80 : index
    %c0_40 = arith.constant 0 : index
    %32 = vector.load %arg9[%c80, %c0_40] : memref<128x128xbf16, #tpu.memory_space<vmem>>, vector<8x128xbf16>
    tpu.vector_store %arg9[%c80, %c0_40], %31 {strides = array<i32>} : memref<128x128xbf16, #tpu.memory_space<vmem>>, vector<8x128xbf16>,
    %c0_41 = arith.constant 0 : index
    %c8_42 = arith.constant 8 : index
    %c7_43 = arith.constant 7 : index
    %33 = vector.load %arg1[%c0_41, %c8_42, %c7_43] : memref<1x32x256xbf16, #tpu.memory_space<vmem>>, vector<1x8x128xbf16>
    %34 = vector.shape_cast %33 : vector<1x8x128xbf16> to vector<8x128xbf16>
    %c88 = arith.constant 88 : index
    %c0_44 = arith.constant 0 : index
    %35 = vector.load %arg9[%c88, %c0_44] : memref<128x128xbf16, #tpu.memory_space<vmem>>, vector<8x128xbf16>
    tpu.vector_store %arg9[%c88, %c0_44], %34 {strides = array<i32>} : memref<128x128xbf16, #tpu.memory_space<vmem>>, vector<8x128xbf16>,
    %c0_45 = arith.constant 0 : index
    %c16_46 = arith.constant 16 : index
    %c6_47 = arith.constant 6 : index
    %36 = vector.load %arg1[%c0_45, %c16_46, %c6_47] : memref<1x32x256xbf16, #tpu.memory_space<vmem>>, vector<1x8x128xbf16>
    %37 = vector.shape_cast %36 : vector<1x8x128xbf16> to vector<8x128xbf16>
    %c96 = arith.constant 96 : index
    %c0_48 = arith.constant 0 : index
    %38 = vector.load %arg9[%c96, %c0_48] : memref<128x128xbf16, #tpu.memory_space<vmem>>, vector<8x128xbf16>
    tpu.vector_store %arg9[%c96, %c0_48], %37 {strides = array<i32>} : memref<128x128xbf16, #tpu.memory_space<vmem>>, vector<8x128xbf16>,
    %c0_49 = arith.constant 0 : index
    %c24_50 = arith.constant 24 : index
    %c6_51 = arith.constant 6 : index
    %39 = vector.load %arg1[%c0_49, %c24_50, %c6_51] : memref<1x32x256xbf16, #tpu.memory_space<vmem>>, vector<1x8x128xbf16>
    %40 = vector.shape_cast %39 : vector<1x8x128xbf16> to vector<8x128xbf16>
    %c104 = arith.constant 104 : index
    %c0_52 = arith.constant 0 : index
    %41 = vector.load %arg9[%c104, %c0_52] : memref<128x128xbf16, #tpu.memory_space<vmem>>, vector<8x128xbf16>
    tpu.vector_store %arg9[%c104, %c0_52], %40 {strides = array<i32>} : memref<128x128xbf16, #tpu.memory_space<vmem>>, vector<8x128xbf16>,
    %c0_53 = arith.constant 0 : index
    %c16_54 = arith.constant 16 : index
    %c7_55 = arith.constant 7 : index
    %42 = vector.load %arg1[%c0_53, %c16_54, %c7_55] : memref<1x32x256xbf16, #tpu.memory_space<vmem>>, vector<1x8x128xbf16>
    %43 = vector.shape_cast %42 : vector<1x8x128xbf16> to vector<8x128xbf16>
    %c112 = arith.constant 112 : index
    %c0_56 = arith.constant 0 : index
    %44 = vector.load %arg9[%c112, %c0_56] : memref<128x128xbf16, #tpu.memory_space<vmem>>, vector<8x128xbf16>
    tpu.vector_store %arg9[%c112, %c0_56], %43 {strides = array<i32>} : memref<128x128xbf16, #tpu.memory_space<vmem>>, vector<8x128xbf16>,
    %c0_57 = arith.constant 0 : index
    %c24_58 = arith.constant 24 : index
    %c7_59 = arith.constant 7 : index
    %45 = vector.load %arg1[%c0_57, %c24_58, %c7_59] : memref<1x32x256xbf16, #tpu.memory_space<vmem>>, vector<1x8x128xbf16>
    %46 = vector.shape_cast %45 : vector<1x8x128xbf16> to vector<8x128xbf16>
    %c120 = arith.constant 120 : index
    %c0_60 = arith.constant 0 : index
    %47 = vector.load %arg9[%c120, %c0_60] : memref<128x128xbf16, #tpu.memory_space<vmem>>, vector<8x128xbf16>
    tpu.vector_store %arg9[%c120, %c0_60], %46 {strides = array<i32>} : memref<128x128xbf16, #tpu.memory_space<vmem>>, vector<8x128xbf16>,
    %c0_61 = arith.constant 0 : index
    %c0_62 = arith.constant 0 : index
    %48 = vector.load %arg3[%c0_61, %c0_62] : memref<16x128xbf16, #tpu.memory_space<vmem>>, vector<16x128xbf16>
    %c0_63 = arith.constant 0 : index
    %c0_64 = arith.constant 0 : index
    %49 = vector.load %arg9[%c0_63, %c0_64] : memref<128x128xbf16, #tpu.memory_space<vmem>>, vector<128x128xbf16>
    %cst = arith.constant dense<0.000000e+00> : vector<16x128xf32>
    %50 = tpu.matmul %48, %49, %cst {dimension_numbers = #tpu.dot_dimension_numbers<[1], [0], [0], [1], [0, 0, 1, 1], [], []>} : vector<16x128xbf16>, vector<128x128xbf16>, vector<16x128xf32> -> vector<16x128xf32>
    %c0_65 = arith.constant 0 : index
    %c0_66 = arith.constant 0 : index
    %51 = vector.load %arg4[%c0_65, %c0_66] : memref<16x1xf32, #tpu.memory_space<vmem>>, vector<16x1xf32>
    %52 = vector.broadcast %51 : vector<16x1xf32> to vector<16x128xf32>
    %53 = arith.addf %50, %52 : vector<16x128xf32>
    %cst_67 = arith.constant 0.000000e+00 : f32
    %54 = vector.broadcast %cst_67 : f32 to vector<16x128xf32>
    %55 = arith.cmpf oge, %53, %54 : vector<16x128xf32>
    %cst_68 = arith.constant 2.000000e-01 : f32
    %56 = vector.broadcast %cst_68 : f32 to vector<16x128xf32>
    %57 = arith.mulf %56, %53 : vector<16x128xf32>
    %58 = arith.select %55, %53, %57 : vector<16x128xi1>, vector<16x128xf32>
    %c0_69 = arith.constant 0 : index
    %c0_70 = arith.constant 0 : index
    %59 = vector.load %arg2[%c0_69, %c0_70] : memref<1x128xf32, #tpu.memory_space<vmem>>, vector<1x128xf32>
    %60 = vector.broadcast %59 : vector<1x128xf32> to vector<16x128xf32>
    %61 = arith.mulf %58, %60 : vector<16x128xf32>
    %cst_71 = arith.constant 0.000000e+00 : bf16
    %62 = vector.broadcast %cst_71 : bf16 to vector<16x256xbf16>
    %c0_72 = arith.constant 0 : index
    %c0_73 = arith.constant 0 : index
    %63 = vector.load %arg8[%c0_72, %c0_73] : memref<16x256xbf16, #tpu.memory_space<vmem>>, vector<16x256xbf16>
    tpu.vector_store %arg8[%c0_72, %c0_73], %62 {strides = array<i32>} : memref<16x256xbf16, #tpu.memory_space<vmem>>, vector<16x256xbf16>,
    %64 = arith.truncf %61 : vector<16x128xf32> to vector<16x128xbf16>
    %c0_74 = arith.constant 0 : index
    %c14 = arith.constant 14 : index
    %65 = vector.load %arg8[%c0_74, %c14] : memref<16x256xbf16, #tpu.memory_space<vmem>>, vector<16x128xbf16>
    tpu.vector_store %arg8[%c0_74, %c14], %64 {strides = array<i32>} : memref<16x256xbf16, #tpu.memory_space<vmem>>, vector<16x128xbf16>,
    %c0_75 = arith.constant 0 : index
    %c0_76 = arith.constant 0 : index
    %66 = vector.load %arg8[%c0_75, %c0_76] : memref<16x256xbf16, #tpu.memory_space<vmem>>, vector<16x128xbf16>
    %c0_77 = arith.constant 0 : index
    %c0_78 = arith.constant 0 : index
    %67 = vector.load %arg10[%c0_77, %c0_78] : memref<144x128xbf16, #tpu.memory_space<vmem>>, vector<16x128xbf16>
    tpu.vector_store %arg10[%c0_77, %c0_78], %66 {strides = array<i32>} : memref<144x128xbf16, #tpu.memory_space<vmem>>, vector<16x128xbf16>,
    %c0_79 = arith.constant 0 : index
    %c1_80 = arith.constant 1 : index
    %68 = vector.load %arg8[%c0_79, %c1_80] : memref<16x256xbf16, #tpu.memory_space<vmem>>, vector<16x128xbf16>
    %c16_81 = arith.constant 16 : index
    %c0_82 = arith.constant 0 : index
    %69 = vector.load %arg10[%c16_81, %c0_82] : memref<144x128xbf16, #tpu.memory_space<vmem>>, vector<16x128xbf16>
    tpu.vector_store %arg10[%c16_81, %c0_82], %68 {strides = array<i32>} : memref<144x128xbf16, #tpu.memory_space<vmem>>, vector<16x128xbf16>,
    %c0_83 = arith.constant 0 : index
    %c2 = arith.constant 2 : index
    %70 = vector.load %arg8[%c0_83, %c2] : memref<16x256xbf16, #tpu.memory_space<vmem>>, vector<16x128xbf16>
    %c32_84 = arith.constant 32 : index
    %c0_85 = arith.constant 0 : index
    %71 = vector.load %arg10[%c32_84, %c0_85] : memref<144x128xbf16, #tpu.memory_space<vmem>>, vector<16x128xbf16>
    tpu.vector_store %arg10[%c32_84, %c0_85], %70 {strides = array<i32>} : memref<144x128xbf16, #tpu.memory_space<vmem>>, vector<16x128xbf16>,
    %c0_86 = arith.constant 0 : index
    %c6_87 = arith.constant 6 : index
    %72 = vector.load %arg8[%c0_86, %c6_87] : memref<16x256xbf16, #tpu.memory_space<vmem>>, vector<16x128xbf16>
    %c48_88 = arith.constant 48 : index
    %c0_89 = arith.constant 0 : index
    %73 = vector.load %arg10[%c48_88, %c0_89] : memref<144x128xbf16, #tpu.memory_space<vmem>>, vector<16x128xbf16>
    tpu.vector_store %arg10[%c48_88, %c0_89], %72 {strides = array<i32>} : memref<144x128xbf16, #tpu.memory_space<vmem>>, vector<16x128xbf16>,
    %c0_90 = arith.constant 0 : index
    %c7_91 = arith.constant 7 : index
    %74 = vector.load %arg8[%c0_90, %c7_91] : memref<16x256xbf16, #tpu.memory_space<vmem>>, vector<16x128xbf16>
    %c64_92 = arith.constant 64 : index
    %c0_93 = arith.constant 0 : index
    %75 = vector.load %arg10[%c64_92, %c0_93] : memref<144x128xbf16, #tpu.memory_space<vmem>>, vector<16x128xbf16>
    tpu.vector_store %arg10[%c64_92, %c0_93], %74 {strides = array<i32>} : memref<144x128xbf16, #tpu.memory_space<vmem>>, vector<16x128xbf16>,
    %c0_94 = arith.constant 0 : index
    %c8_95 = arith.constant 8 : index
    %76 = vector.load %arg8[%c0_94, %c8_95] : memref<16x256xbf16, #tpu.memory_space<vmem>>, vector<16x128xbf16>
    %c80_96 = arith.constant 80 : index
    %c0_97 = arith.constant 0 : index
    %77 = vector.load %arg10[%c80_96, %c0_97] : memref<144x128xbf16, #tpu.memory_space<vmem>>, vector<16x128xbf16>
    tpu.vector_store %arg10[%c80_96, %c0_97], %76 {strides = array<i32>} : memref<144x128xbf16, #tpu.memory_space<vmem>>, vector<16x128xbf16>,
    %c0_98 = arith.constant 0 : index
    %c12 = arith.constant 12 : index
    %78 = vector.load %arg8[%c0_98, %c12] : memref<16x256xbf16, #tpu.memory_space<vmem>>, vector<16x128xbf16>
    %c96_99 = arith.constant 96 : index
    %c0_100 = arith.constant 0 : index
    %79 = vector.load %arg10[%c96_99, %c0_100] : memref<144x128xbf16, #tpu.memory_space<vmem>>, vector<16x128xbf16>
    tpu.vector_store %arg10[%c96_99, %c0_100], %78 {strides = array<i32>} : memref<144x128xbf16, #tpu.memory_space<vmem>>, vector<16x128xbf16>,
    %c0_101 = arith.constant 0 : index
    %c13 = arith.constant 13 : index
    %80 = vector.load %arg8[%c0_101, %c13] : memref<16x256xbf16, #tpu.memory_space<vmem>>, vector<16x128xbf16>
    %c112_102 = arith.constant 112 : index
    %c0_103 = arith.constant 0 : index
    %81 = vector.load %arg10[%c112_102, %c0_103] : memref<144x128xbf16, #tpu.memory_space<vmem>>, vector<16x128xbf16>
    tpu.vector_store %arg10[%c112_102, %c0_103], %80 {strides = array<i32>} : memref<144x128xbf16, #tpu.memory_space<vmem>>, vector<16x128xbf16>,
    %c0_104 = arith.constant 0 : index
    %c14_105 = arith.constant 14 : index
    %82 = vector.load %arg8[%c0_104, %c14_105] : memref<16x256xbf16, #tpu.memory_space<vmem>>, vector<16x128xbf16>
    %c128 = arith.constant 128 : index
    %c0_106 = arith.constant 0 : index
    %83 = vector.load %arg10[%c128, %c0_106] : memref<144x128xbf16, #tpu.memory_space<vmem>>, vector<16x128xbf16>
    tpu.vector_store %arg10[%c128, %c0_106], %82 {strides = array<i32>} : memref<144x128xbf16, #tpu.memory_space<vmem>>, vector<16x128xbf16>,
    %c0_107 = arith.constant 0 : index
    %c0_108 = arith.constant 0 : index
    %84 = vector.load %arg5[%c0_107, %c0_108] : memref<32x144xbf16, #tpu.memory_space<vmem>>, vector<32x144xbf16>
    %c0_109 = arith.constant 0 : index
    %c0_110 = arith.constant 0 : index
    %85 = vector.load %arg10[%c0_109, %c0_110] : memref<144x128xbf16, #tpu.memory_space<vmem>>, vector<144x128xbf16>
    %cst_111 = arith.constant dense<0.000000e+00> : vector<32x128xf32>
    %86 = tpu.matmul %84, %85, %cst_111 {dimension_numbers = #tpu.dot_dimension_numbers<[1], [0], [0], [1], [0, 0, 1, 1], [], []>} : vector<32x144xbf16>, vector<144x128xbf16>, vector<32x128xf32> -> vector<32x128xf32>
    %c0_112 = arith.constant 0 : index
    %c0_113 = arith.constant 0 : index
    %87 = vector.load %arg6[%c0_112, %c0_113] : memref<32x1xf32, #tpu.memory_space<vmem>>, vector<32x1xf32>
    %88 = vector.broadcast %87 : vector<32x1xf32> to vector<32x128xf32>
    %89 = arith.addf %86, %88 : vector<32x128xf32>
    %90 = vector.extract_strided_slice %89 {offsets = [0, 0], sizes = [16, 128], strides = [1, 1]} : vector<32x128xf32> to vector<16x128xf32>
    %91 = arith.negf %90 : vector<16x128xf32>
    %92 = math.exp %91 : vector<16x128xf32>
    %cst_114 = arith.constant 1.000000e+00 : f32
    %93 = vector.broadcast %cst_114 : f32 to vector<16x128xf32>
    %94 = arith.addf %93, %92 : vector<16x128xf32>
    %95 = arith.divf %93, %94 : vector<16x128xf32>
    %96 = vector.extract_strided_slice %89 {offsets = [16, 0], sizes = [16, 128], strides = [1, 1]} : vector<32x128xf32> to vector<16x128xf32>
    %97 = math.tanh %96 : vector<16x128xf32>
    %98 = arith.mulf %97, %95 : vector<16x128xf32>
    %c0_115 = arith.constant 0 : index
    %c0_116 = arith.constant 0 : index
    %c0_117 = arith.constant 0 : index
    %99 = vector.load %arg7[%c0_115, %c0_116, %c0_117] : memref<1x16x128xf32, #tpu.memory_space<vmem>>, vector<1x16x128xf32>
    %100 = vector.shape_cast %99 : vector<1x16x128xf32> to vector<16x128xf32>
    %101 = vector.shape_cast %98 : vector<16x128xf32> to vector<1x16x128xf32>
    tpu.vector_store %arg7[%c0_115, %c0_116, %c0_117], %101 {strides = array<i32>} : memref<1x16x128xf32, #tpu.memory_space<vmem>>, vector<1x16x128xf32>,
    return
  }
  func.func @transform_0(%arg0: i32) -> (i32, i32, i32) {
    %c0_i32 = arith.constant 0 : i32
    %c0_i32_0 = arith.constant 0 : i32
    %c0_i32_1 = arith.constant 0 : i32
    return %arg0, %c0_i32, %c0_i32_0 : i32, i32, i32
  }
  func.func @transform_1(%arg0: i32) -> (i32, i32) {
    %c0_i32 = arith.constant 0 : i32
    %c0_i32_0 = arith.constant 0 : i32
    %c0_i32_1 = arith.constant 0 : i32
    return %c0_i32, %c0_i32_0 : i32, i32
  }
  func.func @transform_2(%arg0: i32) -> (i32, i32) {
    %c0_i32 = arith.constant 0 : i32
    %c0_i32_0 = arith.constant 0 : i32
    %c0_i32_1 = arith.constant 0 : i32
    return %c0_i32, %c0_i32_0 : i32, i32
  }
  func.func @transform_3(%arg0: i32) -> (i32, i32) {
    %c0_i32 = arith.constant 0 : i32
    %c0_i32_0 = arith.constant 0 : i32
    %c0_i32_1 = arith.constant 0 : i32
    return %c0_i32, %c0_i32_0 : i32, i32
  }
  func.func @transform_4(%arg0: i32) -> (i32, i32) {
    %c0_i32 = arith.constant 0 : i32
    %c0_i32_0 = arith.constant 0 : i32
    %c0_i32_1 = arith.constant 0 : i32
    return %c0_i32, %c0_i32_0 : i32, i32
  }
  func.func @transform_5(%arg0: i32) -> (i32, i32) {
    %c0_i32 = arith.constant 0 : i32
    %c0_i32_0 = arith.constant 0 : i32
    %c0_i32_1 = arith.constant 0 : i32
    return %c0_i32, %c0_i32_0 : i32, i32
  }
  func.func @transform_6(%arg0: i32) -> (i32, i32, i32) {
    %c0_i32 = arith.constant 0 : i32
    %c0_i32_0 = arith.constant 0 : i32
    %c0_i32_1 = arith.constant 0 : i32
    return %arg0, %c0_i32, %c0_i32_0 : i32, i32, i32
  }
}

</mosaic_0001>

<llo_original>
// kernel: encoder_forward.2
$region0: #{encoder_forward.2}
  #allocation0 [shape = 'u32[]', space=smem, size = 0x4, offset = 0x4, fixed_abs, tag = 'smem constant byte address 0x4 - core index']
  #allocation1 [shape = 'u32[144,128]{1,0:T(1,128)}', space=vmem, size = 0x12000, scoped, tag = 'internal scratch']
  #allocation2 [shape = 'bf16[8,256]{1,0:T(8,128)(2,1)}', space=vmem, size = 0x1000, scoped, tag = 'scratch operand']
  #allocation3 [shape = 'bf16[128,128]{1,0:T(16,128)(2,1)}', space=vmem, size = 0x8000, scoped, tag = 'scratch operand']
  #allocation4 [shape = 'bf16[72,128]{1,0:T(8,128)(2,1)}', space=vmem, size = 0x4800, scoped, tag = 'scratch operand']
  %s0 = inlined_call_operand.vmem [shape: bf16[2,32,256], index: 0, kind: input, shape index: {}]
  %s1 = inlined_call_operand.vmem [shape: f32[1,128], index: 1, kind: input, shape index: {}]
  %s2 = inlined_call_operand.vmem [shape: bf16[8,128], index: 2, kind: input, shape index: {}]
  %s3 = inlined_call_operand.vmem [shape: f32[8,1], index: 3, kind: input, shape index: {}]
  %s4 = inlined_call_operand.vmem [shape: bf16[16,72], index: 4, kind: input, shape index: {}]
  %s5 = inlined_call_operand.vmem [shape: f32[16,1], index: 5, kind: input, shape index: {}]
  %s6 = inlined_call_operand.vmem [shape: f32[2,8,128], index: 6, kind: output, shape index: {}]
  %s7 = sld [smem:[#allocation0]]
  $region57: #{encoder_forward.2} parent=0
    _
  %s9 = ssub.s32 1, %s7
  %s10 = scalar_select 0, %s9, %s7
  loop: start=0, step=1, limit=4
  $region2: #{encoder_forward.2} parent=0 // loop_pre_header
    _
  $region3: #{encoder_forward.2} parent=0 // loop_header
    %s12 = sphi 0, %s16
    %p13 = scmp.ge.s32.totalorder %s12, 4
    %s22 = sphi 0, %s24
    %s25 = sphi 0, %s22
    %s26 = sphi 0, %s25
    %s42 = sphi 0, %s26
    %s46 = sphi 0, %s46
    %s48 = sphi 0, %s46
    %s49 = sphi 0, %s48
    %s63 = sphi 0, %s49
    %s67 = sphi 0, %s67
    %s69 = sphi 0, %s67
    %s70 = sphi 0, %s69
    %s84 = sphi 0, %s70
    %s88 = sphi 0, %s88
    %s90 = sphi 0, %s88
    %s91 = sphi 0, %s90
    %s105 = sphi 0, %s91
    %s109 = sphi 0, %s109
    %s111 = sphi 0, %s109
    %s112 = sphi 0, %s111
    %s126 = sphi 0, %s112
    %s130 = sphi 0, %s130
    %s132 = sphi 0, %s130
    %s133 = sphi 0, %s132
    %s147 = sphi 0, %s133
    %s153 = sphi 0, %s155
    %s156 = sphi 0, %s153
    %s157 = sphi 0, %s156
    %s173 = sphi 0, %s157
  $region4: #{encoder_forward.2} parent=0 // loop_header_branch
    %15 = sbr.rel (%p13) target = $region8
  $region5: #{encoder_forward.2} parent=0 // loop_body
    %s17 = ssub.s32 %s12, 1
    %s18 = ssub.s32 %s12, 2
    %s19 = sadd.s32 %s12, 1
    %s20 = ssub.s32 %s12, %s19
    %p21 = scmp.eq.s32.totalorder %s20, 0
    %s23 = sadd.s32 %s22, 1
    %s24 = scalar_select %p21, %s22, %s23
    %p27 = pneg %p21
    %p28 = scmp.eq.s32.totalorder %s12, 1
    %p29 = por %p27, %p28
    %p30 = scmp.ne.s32.totalorder %s22, %s25
    %p31 = scmp.eq.s32.totalorder %s12, 0
    %p32 = por %p30, %p31
    %p33 = scmp.ne.s32.totalorder %s22, %s25
    %p34 = scmp.eq.s32.totalorder %s17, 1
    %p35 = por %p33, %p34
    %p36 = scmp.ne.s32.totalorder %s25, %s26
    %p37 = scmp.eq.s32.totalorder %s17, 0
    %p38 = por %p36, %p37
    %p39 = scmp.ne.s32.totalorder %s25, %s26
    %p40 = scmp.eq.s32.totalorder %s18, 1
    %p41 = por %p39, %p40
    %p43 = scmp.ne.s32.totalorder %s26, %s42
    %p44 = scmp.eq.s32.totalorder %s18, 0
    %p45 = por %p43, %p44
    %s47 = sadd.s32 %s46, 1
    %p50 = scmp.eq.s32.totalorder %s12, 1
    %p51 = scmp.ne.s32.totalorder %s46, %s48
    %p52 = scmp.eq.s32.totalorder %s12, 0
    %p53 = por %p51, %p52
    %p54 = scmp.ne.s32.totalorder %s46, %s48
    %p55 = scmp.eq.s32.totalorder %s17, 1
    %p56 = por %p54, %p55
    %p57 = scmp.ne.s32.totalorder %s48, %s49
    %p58 = scmp.eq.s32.totalorder %s17, 0
    %p59 = por %p57, %p58
    %p60 = scmp.ne.s32.totalorder %s48, %s49
    %p61 = scmp.eq.s32.totalorder %s18, 1
    %p62 = por %p60, %p61
    %p64 = scmp.ne.s32.totalorder %s49, %s63
    %p65 = scmp.eq.s32.totalorder %s18, 0
    %p66 = por %p64, %p65
    %s68 = sadd.s32 %s67, 1
    %p71 = scmp.eq.s32.totalorder %s12, 1
    %p72 = scmp.ne.s32.totalorder %s67, %s69
    %p73 = scmp.eq.s32.totalorder %s12, 0
    %p74 = por %p72, %p73
    %p75 = scmp.ne.s32.totalorder %s67, %s69
    %p76 = scmp.eq.s32.totalorder %s17, 1
    %p77 = por %p75, %p76
    %p78 = scmp.ne.s32.totalorder %s69, %s70
    %p79 = scmp.eq.s32.totalorder %s17, 0
    %p80 = por %p78, %p79
    %p81 = scmp.ne.s32.totalorder %s69, %s70
    %p82 = scmp.eq.s32.totalorder %s18, 1
    %p83 = por %p81, %p82
    %p85 = scmp.ne.s32.totalorder %s70, %s84
    %p86 = scmp.eq.s32.totalorder %s18, 0
    %p87 = por %p85, %p86
    %s89 = sadd.s32 %s88, 1
    %p92 = scmp.eq.s32.totalorder %s12, 1
    %p93 = scmp.ne.s32.totalorder %s88, %s90
    %p94 = scmp.eq.s32.totalorder %s12, 0
    %p95 = por %p93, %p94
    %p96 = scmp.ne.s32.totalorder %s88, %s90
    %p97 = scmp.eq.s32.totalorder %s17, 1
    %p98 = por %p96, %p97
    %p99 = scmp.ne.s32.totalorder %s90, %s91
    %p100 = scmp.eq.s32.totalorder %s17, 0
    %p101 = por %p99, %p100
    %p102 = scmp.ne.s32.totalorder %s90, %s91
    %p103 = scmp.eq.s32.totalorder %s18, 1
    %p104 = por %p102, %p103
    %p106 = scmp.ne.s32.totalorder %s91, %s105
    %p107 = scmp.eq.s32.totalorder %s18, 0
    %p108 = por %p106, %p107
    %s110 = sadd.s32 %s109, 1
    %p113 = scmp.eq.s32.totalorder %s12, 1
    %p114 = scmp.ne.s32.totalorder %s109, %s111
    %p115 = scmp.eq.s32.totalorder %s12, 0
    %p116 = por %p114, %p115
    %p117 = scmp.ne.s32.totalorder %s109, %s111
    %p118 = scmp.eq.s32.totalorder %s17, 1
    %p119 = por %p117, %p118
    %p120 = scmp.ne.s32.totalorder %s111, %s112
    %p121 = scmp.eq.s32.totalorder %s17, 0
    %p122 = por %p120, %p121
    %p123 = scmp.ne.s32.totalorder %s111, %s112
    %p124 = scmp.eq.s32.totalorder %s18, 1
    %p125 = por %p123, %p124
    %p127 = scmp.ne.s32.totalorder %s112, %s126
    %p128 = scmp.eq.s32.totalorder %s18, 0
    %p129 = por %p127, %p128
    %s131 = sadd.s32 %s130, 1
    %p134 = scmp.eq.s32.totalorder %s12, 1
    %p135 = scmp.ne.s32.totalorder %s130, %s132
    %p136 = scmp.eq.s32.totalorder %s12, 0
    %p137 = por %p135, %p136
    %p138 = scmp.ne.s32.totalorder %s130, %s132
    %p139 = scmp.eq.s32.totalorder %s17, 1
    %p140 = por %p138, %p139
    %p141 = scmp.ne.s32.totalorder %s132, %s133
    %p142 = scmp.eq.s32.totalorder %s17, 0
    %p143 = por %p141, %p142
    %p144 = scmp.ne.s32.totalorder %s132, %s133
    %p145 = scmp.eq.s32.totalorder %s18, 1
    %p146 = por %p144, %p145
    %p148 = scmp.ne.s32.totalorder %s133, %s147
    %p149 = scmp.eq.s32.totalorder %s18, 0
    %p150 = por %p148, %p149
    %s151 = ssub.s32 %s12, %s19
    %p152 = scmp.eq.s32.totalorder %s151, 0
    %s154 = sadd.s32 %s153, 1
    %s155 = scalar_select %p152, %s153, %s154
    %p158 = pneg %p152
    %p159 = scmp.eq.s32.totalorder %s12, 1
    %p160 = por %p158, %p159
    %p161 = scmp.ne.s32.totalorder %s153, %s156
    %p162 = scmp.eq.s32.totalorder %s12, 0
    %p163 = por %p161, %p162
    %p164 = scmp.ne.s32.totalorder %s153, %s156
    %p165 = scmp.eq.s32.totalorder %s17, 1
    %p166 = por %p164, %p165
    %p167 = scmp.ne.s32.totalorder %s156, %s157
    %p168 = scmp.eq.s32.totalorder %s17, 0
    %p169 = por %p167, %p168
    %p170 = scmp.ne.s32.totalorder %s156, %s157
    %p171 = scmp.eq.s32.totalorder %s18, 1
    %p172 = por %p170, %p171
    %p174 = scmp.ne.s32.totalorder %s157, %s173
    %p175 = scmp.eq.s32.totalorder %s18, 0
    %p176 = por %p174, %p175
    %p177 = scmp.le.s32.totalorder 1, %s12
    %p178 = scmp.lt.s32.totalorder %s12, 3
    %p179 = pnand %p177, %p178
    %p180 = pneg %p179
    // Predicated region
    $region9: #{encoder_forward.2} parent=5 // pred_check
      _
    $region10: #{encoder_forward.2} parent=5 // pred_check_branch
      %182 = sbr.rel (%p179) target = $region12
    $region11: #{encoder_forward.2} parent=5 // pred_region
      %s183 = ssub.s32 %s12, 1
      // Predicated region
      $region13: #{encoder_forward.2} parent=11 // pred_check
        %p184 = pneg %p59
      $region14: #{encoder_forward.2} parent=11 // pred_check_branch
        %186 = sbr.rel (%p184) target = $region16
      $region15: #{encoder_forward.2} parent=11 // pred_region
        _
      $region16: #{encoder_forward.2} parent=11 // pred_fallthru
        _
      // Predicated region
      $region17: #{encoder_forward.2} parent=11 // pred_check
        %p187 = pneg %p80
      $region18: #{encoder_forward.2} parent=11 // pred_check_branch
        %189 = sbr.rel (%p187) target = $region20
      $region19: #{encoder_forward.2} parent=11 // pred_region
        _
      $region20: #{encoder_forward.2} parent=11 // pred_fallthru
        _
      // Predicated region
      $region21: #{encoder_forward.2} parent=11 // pred_check
        %p190 = pneg %p101
      $region22: #{encoder_forward.2} parent=11 // pred_check_branch
        %192 = sbr.rel (%p190) target = $region24
      $region23: #{encoder_forward.2} parent=11 // pred_region
        _
      $region24: #{encoder_forward.2} parent=11 // pred_fallthru
        _
      // Predicated region
      $region25: #{encoder_forward.2} parent=11 // pred_check
        %p193 = pneg %p122
      $region26: #{encoder_forward.2} parent=11 // pred_check_branch
        %195 = sbr.rel (%p193) target = $region28
      $region27: #{encoder_forward.2} parent=11 // pred_region
        _
      $region28: #{encoder_forward.2} parent=11 // pred_fallthru
        _
      // Predicated region
      $region29: #{encoder_forward.2} parent=11 // pred_check
        %p196 = pneg %p143
      $region30: #{encoder_forward.2} parent=11 // pred_check_branch
        %198 = sbr.rel (%p196) target = $region32
      $region31: #{encoder_forward.2} parent=11 // pred_region
        _
      $region32: #{encoder_forward.2} parent=11 // pred_fallthru
        _
    $region12: #{encoder_forward.2} parent=5 // pred_fallthru
      _
    %p199 = scmp.lt.s32.totalorder %s12, 2
    // Predicated region
    $region33: #{encoder_forward.2} parent=5 // pred_check
      %p200 = pneg %p199
    $region34: #{encoder_forward.2} parent=5 // pred_check_branch
      %202 = sbr.rel (%p200) target = $region36
    $region35: #{encoder_forward.2} parent=5 // pred_region
      // Predicated region
      $region37: #{encoder_forward.2} parent=35 // pred_check
        %p203 = pneg %p32
      $region38: #{encoder_forward.2} parent=35 // pred_check_branch
        %205 = sbr.rel (%p203) target = $region40
      $region39: #{encoder_forward.2} parent=35 // pred_region
        %p206 = scmp.lt.s32.totalorder %s12, 1
        %s207 = scalar_select %p206, %s12, 1
        %s208 = smul.addr %s207, 8
        %s209 = smul.addr %s208, 4
        %s210 = scalar_lea.vmem %s0, %s209
      $region40: #{encoder_forward.2} parent=35 // pred_fallthru
        _
    $region36: #{encoder_forward.2} parent=5 // pred_fallthru
      _
    %p211 = scmp.le.s32.totalorder 1, %s12
    %p212 = scmp.lt.s32.totalorder %s12, 3
    %p213 = pnand %p211, %p212
    %p214 = pneg %p213
    // Predicated region
    $region41: #{encoder_forward.2} parent=5 // pred_check
      _
    $region42: #{encoder_forward.2} parent=5 // pred_check_branch
      %216 = sbr.rel (%p213) target = $region44
    $region43: #{encoder_forward.2} parent=5 // pred_region
      %s217 = ssub.s32 %s12, 1
      %p218 = scmp.lt.s32.totalorder %s17, 1
      %s219 = scalar_select %p218, %s17, 1
      %s220 = smul.addr %s219, 8
      %s221 = smul.addr %s220, 4
      %s222 = scalar_lea.vmem %s0, %s221
      %p223 = pneg %p38
      %p224 = pneg %p35
      %p225 = pneg %p59
      %p226 = pneg %p56
      %p227 = pneg %p80
      %p228 = pneg %p77
      %p229 = pneg %p101
      %p230 = pneg %p98
      %p231 = pneg %p122
      %p232 = pneg %p119
      %p233 = pneg %p143
      %p234 = pneg %p140
      %p235 = pneg %p169
      %p236 = pneg %p166
      %p237 = scmp.lt.s32.totalorder %s17, 1
      %s238 = scalar_select %p237, %s17, 1
      %s239 = smul.addr %s238, 8
      %s240 = scalar_lea.vmem %s6, %s239
      %p241 = scmp.lt.s32.totalorder %s17, 1
      %s242 = scalar_select %p241, %s17, 1
      %s243 = smul.addr %s242, 8
      %s244 = smul.addr %s243, 4
      %s245 = scalar_lea.vmem %s0, %s244
      %p246 = scmp.lt.s32.totalorder %s17, 1
      %s247 = scalar_select %p246, %s17, 1
      %s248 = smul.addr %s247, 8
      %s249 = scalar_lea.vmem %s6, %s248
      %v251 = vld [vmem:[%s245] sm:$0xf]
      %252 = vst [vmem:[#allocation3] sm:$0xf] %v251
      %v253 = vld [vmem:[%s245 + $0x8] sm:$0xf]
      %v255 = vunpack.c.l.b16 %v253
      %v256 = vpack.c.b16 %v255, %v255
      %258 = vst [vmem:[#allocation3] sm:$0xf0] %v256
      %v259 = vld [vmem:[%s245] sm:$0xff]
      %v261 = vunpack.c.l.b16 %v259
      %v262 = vunpack.c.h.b16 %v259
      %v263 = vpack.c.b16 %v261, %v261
      %v264 = vpack.c.b16 %v262, %v262
      %265 = vrot.lane.b32.xlu0 %v263, 127
      %v266 = vpop.permute.xlu0 %265
      %267 = vrot.lane.b32.xlu0 %v264, 127
      %v268 = vpop.permute.xlu0 %267
      %vm269 = vcmask 1039360
      %v270 = vsel %vm269, %v266, %v268
      %272 = vst [vmem:[#allocation3 + $0x8] sm:$0xf] %v270
      %v273 = vld [vmem:[%s245 + $0x8] sm:$0xff]
      %v275 = vunpack.c.l.b16 %v273
      %v276 = vunpack.c.h.b16 %v273
      %v277 = vpack.c.b16 %v275, %v275
      %v278 = vpack.c.b16 %v276, %v276
      %279 = vrot.lane.b32.xlu0 %v277, 127
      %v280 = vpop.permute.xlu0 %279
      %281 = vrot.lane.b32.xlu0 %v278, 127
      %v282 = vpop.permute.xlu0 %281
      %v283 = vsel %vm269, %v280, %v282
      %285 = vst [vmem:[#allocation3 + $0x8] sm:$0xf0] %v283
      %v286 = vld [vmem:[%s245 + $0x10] sm:$0xf]
      %287 = vst [vmem:[#allocation3 + $0x10] sm:$0xf] %v286
      %v288 = vld [vmem:[%s245 + $0x18] sm:$0xf]
      %v290 = vunpack.c.l.b16 %v288
      %v291 = vpack.c.b16 %v290, %v290
      %293 = vst [vmem:[#allocation3 + $0x10] sm:$0xf0] %v291
      %v294 = vld [vmem:[%s245 + $0x10] sm:$0xff]
      %v296 = vunpack.c.l.b16 %v294
      %v297 = vunpack.c.h.b16 %v294
      %v298 = vpack.c.b16 %v296, %v296
      %v299 = vpack.c.b16 %v297, %v297
      %300 = vrot.lane.b32.xlu0 %v298, 127
      %v301 = vpop.permute.xlu0 %300
      %302 = vrot.lane.b32.xlu0 %v299, 127
      %v303 = vpop.permute.xlu0 %302
      %v304 = vsel %vm269, %v301, %v303
      %306 = vst [vmem:[#allocation3 + $0x18] sm:$0xf] %v304
      %v307 = vld [vmem:[%s245 + $0x18] sm:$0xff]
      %v309 = vunpack.c.l.b16 %v307
      %v310 = vunpack.c.h.b16 %v307
      %v311 = vpack.c.b16 %v309, %v309
      %v312 = vpack.c.b16 %v310, %v310
      %313 = vrot.lane.b32.xlu0 %v311, 127
      %v314 = vpop.permute.xlu0 %313
      %315 = vrot.lane.b32.xlu0 %v312, 127
      %v316 = vpop.permute.xlu0 %315
      %v317 = vsel %vm269, %v314, %v316
      %319 = vst [vmem:[#allocation3 + $0x18] sm:$0xf0] %v317
      %v320 = vld [vmem:[%s245] sm:$0xff]
      %v322 = vunpack.c.l.b16 %v320
      %v323 = vunpack.c.h.b16 %v320
      %v324 = vpack.c.b16 %v322, %v322
      %v325 = vpack.c.b16 %v323, %v323
      %326 = vrot.lane.b32.xlu0 %v324, 118
      %v327 = vpop.permute.xlu0 %326
      %328 = vrot.lane.b32.xlu0 %v325, 118
      %v329 = vpop.permute.xlu0 %328
      %vm330 = vcmask 965632
      %v331 = vsel %vm330, %v327, %v329
      %333 = vst [vmem:[#allocation3 + $0x20] sm:$0xf] %v331
      %v334 = vld [vmem:[%s245 + $0x8] sm:$0xff]
      %v336 = vunpack.c.l.b16 %v334
      %v337 = vunpack.c.h.b16 %v334
      %v338 = vpack.c.b16 %v336, %v336
      %v339 = vpack.c.b16 %v337, %v337
      %340 = vrot.lane.b32.xlu0 %v338, 118
      %v341 = vpop.permute.xlu0 %340
      %342 = vrot.lane.b32.xlu0 %v339, 118
      %v343 = vpop.permute.xlu0 %342
      %v344 = vsel %vm330, %v341, %v343
      %346 = vst [vmem:[#allocation3 + $0x20] sm:$0xf0] %v344
      %v347 = vld [vmem:[%s245] sm:$0xff]
      %v349 = vunpack.c.l.b16 %v347
      %v350 = vunpack.c.h.b16 %v347
      %v351 = vpack.c.b16 %v349, %v349
      %v352 = vpack.c.b16 %v350, %v350
      %353 = vrot.lane.b32.xlu0 %v351, 117
      %v354 = vpop.permute.xlu0 %353
      %355 = vrot.lane.b32.xlu0 %v352, 117
      %v356 = vpop.permute.xlu0 %355
      %vm357 = vcmask 957440
      %v358 = vsel %vm357, %v354, %v356
      %360 = vst [vmem:[#allocation3 + $0x28] sm:$0xf] %v358
      %v361 = vld [vmem:[%s245 + $0x8] sm:$0xff]
      %v363 = vunpack.c.l.b16 %v361
      %v364 = vunpack.c.h.b16 %v361
      %v365 = vpack.c.b16 %v363, %v363
      %v366 = vpack.c.b16 %v364, %v364
      %367 = vrot.lane.b32.xlu0 %v365, 117
      %v368 = vpop.permute.xlu0 %367
      %369 = vrot.lane.b32.xlu0 %v366, 117
      %v370 = vpop.permute.xlu0 %369
      %v371 = vsel %vm357, %v368, %v370
      %373 = vst [vmem:[#allocation3 + $0x28] sm:$0xf0] %v371
      %v374 = vld [vmem:[%s245 + $0x10] sm:$0xff]
      %v376 = vunpack.c.l.b16 %v374
      %v377 = vunpack.c.h.b16 %v374
      %v378 = vpack.c.b16 %v376, %v376
      %v379 = vpack.c.b16 %v377, %v377
      %380 = vrot.lane.b32.xlu0 %v378, 118
      %v381 = vpop.permute.xlu0 %380
      %382 = vrot.lane.b32.xlu0 %v379, 118
      %v383 = vpop.permute.xlu0 %382
      %v384 = vsel %vm330, %v381, %v383
      %386 = vst [vmem:[#allocation3 + $0x30] sm:$0xf] %v384
      %v387 = vld [vmem:[%s245 + $0x18] sm:$0xff]
      %v389 = vunpack.c.l.b16 %v387
      %v390 = vunpack.c.h.b16 %v387
      %v391 = vpack.c.b16 %v389, %v389
      %v392 = vpack.c.b16 %v390, %v390
      %393 = vrot.lane.b32.xlu0 %v391, 118
      %v394 = vpop.permute.xlu0 %393
      %395 = vrot.lane.b32.xlu0 %v392, 118
      %v396 = vpop.permute.xlu0 %395
      %v397 = vsel %vm330, %v394, %v396
      %399 = vst [vmem:[#allocation3 + $0x30] sm:$0xf0] %v397
      %v400 = vld [vmem:[%s245 + $0x10] sm:$0xff]
      %v402 = vunpack.c.l.b16 %v400
      %v403 = vunpack.c.h.b16 %v400
      %v404 = vpack.c.b16 %v402, %v402
      %v405 = vpack.c.b16 %v403, %v403
      %406 = vrot.lane.b32.xlu0 %v404, 117
      %v407 = vpop.permute.xlu0 %406
      %408 = vrot.lane.b32.xlu0 %v405, 117
      %v409 = vpop.permute.xlu0 %408
      %v410 = vsel %vm357, %v407, %v409
      %412 = vst [vmem:[#allocation3 + $0x38] sm:$0xf] %v410
      %v413 = vld [vmem:[%s245 + $0x18] sm:$0xff]
      %v415 = vunpack.c.l.b16 %v413
      %v416 = vunpack.c.h.b16 %v413
      %v417 = vpack.c.b16 %v415, %v415
      %v418 = vpack.c.b16 %v416, %v416
      %419 = vrot.lane.b32.xlu0 %v417, 117
      %v420 = vpop.permute.xlu0 %419
      %421 = vrot.lane.b32.xlu0 %v418, 117
      %v422 = vpop.permute.xlu0 %421
      %v423 = vsel %vm357, %v420, %v422
      %425 = vst [vmem:[#allocation3 + $0x38] sm:$0xf0] %v423
      %v426 = vld [vmem:[%s2] sm:$0xf]
      %v427 = vld [vmem:[#allocation3] sm:$0xff]
      %v428 = vld [vmem:[#allocation3 + $0x8] sm:$0xff]
      %v429 = vld [vmem:[#allocation3 + $0x10] sm:$0xff]
      %v430 = vld [vmem:[#allocation3 + $0x18] sm:$0xff]
      %v431 = vld [vmem:[#allocation3 + $0x20] sm:$0xff]
      %v432 = vld [vmem:[#allocation3 + $0x28] sm:$0xff]
      %v433 = vld [vmem:[#allocation3 + $0x30] sm:$0xff]
      %v434 = vld [vmem:[#allocation3 + $0x38] sm:$0xff]
      %v435 = vld [vmem:[%s3] sm:$0xff]
      %437 = vset.pattern.permute.xlu0 0
      %438 = vperm.xlu0 %437, %v435
      %v439 = vpop.permute.xlu0 %438
      %441 = vmatprep.subr.bf16.mxu0 0
      %442 = vmatpush1.bf16.msra.mxu0 %v427
      %443 = vmatprep.subr.bf16.mxu0 0
      %444 = vmatpush1.bf16.msra.mxu0 %v428
      %445 = vmatprep.subr.bf16.mxu0 0
      %446 = vmatpush1.bf16.msra.mxu0 %v429
      %447 = vmatprep.subr.bf16.mxu0 0
      %448 = vmatpush1.bf16.msra.mxu0 %v430
      %449 = vmatprep.subr.bf16.mxu0 0
      %450 = vmatpush1.bf16.msra.mxu0 %v431
      %451 = vmatprep.subr.bf16.mxu0 0
      %452 = vmatpush1.bf16.msra.mxu0 %v432
      %453 = vmatprep.subr.bf16.mxu0 0
      %454 = vmatpush1.bf16.msra.mxu0 %v433
      %455 = vmatprep.subr.bf16.mxu0 0
      %456 = vmatpush1.bf16.msra.mxu0 %v434
      %457 = vmatprep.subr.bf16.mxu0 0
      %458 = vmatpush1.bf16.msra.mxu0 0
      %459 = vmatprep.subr.bf16.mxu0 0
      %460 = vmatpush1.bf16.msra.mxu0 0
      %461 = vmatprep.subr.bf16.mxu0 0
      %462 = vmatpush1.bf16.msra.mxu0 0
      %463 = vmatprep.subr.bf16.mxu0 0
      %464 = vmatpush1.bf16.msra.mxu0 0
      %465 = vmatprep.subr.bf16.mxu0 0
      %466 = vmatpush1.bf16.msra.mxu0 0
      %467 = vmatprep.subr.bf16.mxu0 0
      %468 = vmatpush1.bf16.msra.mxu0 0
      %469 = vmatprep.subr.bf16.mxu0 0
      %470 = vmatpush1.bf16.msra.mxu0 0
      %471 = vmatprep.subr.bf16.mxu0 0
      %472 = vmatpush1.bf16.msra.mxu0 0
      %473 = vmatprep.mubr.bf16.mxu0 0
      %474 = vmatmul.mubr.bf16.gmra.mrb[0].mxu0 %v426
      %v475 = vpop.f32.mrb[0].mxu0
      %v476 = vadd.f32 %v439, %v475
      %v477 = vpop.f32.mrb[0].mxu0
      %v478 = vpop.f32.mrb[0].mxu0
      %v479 = vpop.f32.mrb[0].mxu0
      %480 = vdwg.mxu0
      %vm481 = vcmp.ge.f32.partialorder %v476, 0.0
      %v482 = vmul.f32 %v476, 0.2
      %v483 = vsel %vm481, %v476, %v482
      %v484 = vld [vmem:[%s1] sm:$0x1]
      %v486 = vlaneseq
      %v487 = vshrl.u32 %v486, 7
      %v488 = vsub.s32 0, %v487
      %v489 = vrot.slane %v484, %v488
      %v491 = vmul.f32 %v483, %v489
      %492 = vst [vmem:[#allocation2] sm:$0xff] 0
      %v493 = vpack.c.bf16 %v491, %v491
      %v495 = vunpack.c.l.b16 %v493
      %v496 = vpack.c.b16 %v495, %v495
      %497 = vrot.lane.b32.xlu0 %v496, 22
      %v498 = vpop.permute.xlu0 %497
      %v499 = vrot.slane %v498, 4
      %vm500 = vcmask 179200
      %v501 = vsel %vm500, %v499, %v498
      %vm503 = vcmask 1043632
      %vm504 = vcmask 179204
      %vm505 = vmor %vm504, %vm503
      %506 = vst.msk [vmem:[#allocation2] sm:$0xff] %vm505, %v501
      %v507 = vld [vmem:[#allocation2] sm:$0xf]
      %508 = vst [vmem:[#allocation4] sm:$0xf] %v507
      %v509 = vld [vmem:[#allocation2] sm:$0xff]
      %511 = vrot.lane.b32.xlu0 %v509, 127
      %v512 = vpop.permute.xlu0 %511
      %v513 = vrot.slane %v512, 4
      %v514 = vsel %vm269, %v512, %v513
      %516 = vst [vmem:[#allocation4 + $0x4] sm:$0xf] %v514
      %v517 = vld [vmem:[#allocation2] sm:$0xff]
      %519 = vrot.lane.b32.xlu0 %v517, 126
      %v520 = vpop.permute.xlu0 %519
      %v521 = vrot.slane %v520, 4
      %vm522 = vcmask 1031168
      %v523 = vsel %vm522, %v520, %v521
      %525 = vst [vmem:[#allocation4 + $0x8] sm:$0xf] %v523
      %v526 = vld [vmem:[#allocation2] sm:$0xff]
      %528 = vrot.lane.b32.xlu0 %v526, 118
      %v529 = vpop.permute.xlu0 %528
      %v530 = vrot.slane %v529, 4
      %v531 = vsel %vm330, %v529, %v530
      %533 = vst [vmem:[#allocation4 + $0xc] sm:$0xf] %v531
      %v534 = vld [vmem:[#allocation2] sm:$0xff]
      %536 = vrot.lane.b32.xlu0 %v534, 117
      %v537 = vpop.permute.xlu0 %536
      %v538 = vrot.slane %v537, 4
      %v539 = vsel %vm357, %v537, %v538
      %541 = vst [vmem:[#allocation4 + $0x10] sm:$0xf] %v539
      %v542 = vld [vmem:[#allocation2] sm:$0xff]
      %544 = vrot.lane.b32.xlu0 %v542, 116
      %v545 = vpop.permute.xlu0 %544
      %v546 = vrot.slane %v545, 4
      %vm547 = vcmask 949248
      %v548 = vsel %vm547, %v545, %v546
      %550 = vst [vmem:[#allocation4 + $0x14] sm:$0xf] %v548
      %v551 = vld [vmem:[#allocation2] sm:$0xff]
      %553 = vrot.lane.b32.xlu0 %v551, 108
      %v554 = vpop.permute.xlu0 %553
      %v555 = vrot.slane %v554, 4
      %vm556 = vcmask 883712
      %v557 = vsel %vm556, %v554, %v555
      %559 = vst [vmem:[#allocation4 + $0x18] sm:$0xf] %v557
      %v560 = vld [vmem:[#allocation2] sm:$0xff]
      %562 = vrot.lane.b32.xlu0 %v560, 107
      %v563 = vpop.permute.xlu0 %562
      %v564 = vrot.slane %v563, 4
      %vm565 = vcmask 875520
      %v566 = vsel %vm565, %v563, %v564
      %568 = vst [vmem:[#allocation4 + $0x1c] sm:$0xf] %v566
      %v569 = vld [vmem:[#allocation2] sm:$0xff]
      %571 = vrot.lane.b32.xlu0 %v569, 106
      %v572 = vpop.permute.xlu0 %571
      %v573 = vrot.slane %v572, 4
      %vm574 = vcmask 867328
      %v575 = vsel %vm574, %v572, %v573
      %577 = vst [vmem:[#allocation4 + $0x20] sm:$0xf] %v575
      %v578 = vld [vmem:[%s4] sm:$0xf]
      %v579 = vld [vmem:[%s4 + $0x4] sm:$0xf]
      %v580 = vld [vmem:[#allocation4] sm:$0xf]
      %v581 = vld [vmem:[#allocation4 + $0x4] sm:$0xf]
      %v582 = vld [vmem:[#allocation4 + $0x8] sm:$0xf]
      %v583 = vld [vmem:[#allocation4 + $0xc] sm:$0xf]
      %v584 = vld [vmem:[#allocation4 + $0x10] sm:$0xf]
      %v585 = vld [vmem:[#allocation4 + $0x14] sm:$0xf]
      %v586 = vld [vmem:[#allocation4 + $0x18] sm:$0xf]
      %v587 = vld [vmem:[#allocation4 + $0x1c] sm:$0xf]
      %v588 = vld [vmem:[#allocation4 + $0x20] sm:$0xf]
      %v589 = vld [vmem:[%s5] sm:$0xff]
      %v590 = vld [vmem:[%s5 + $0x8] sm:$0xff]
      %592 = vset.pattern.permute.xlu0 0
      %593 = vperm.xlu0 %592, %v589
      %v594 = vpop.permute.xlu0 %593
      %597 = vset.pattern.permute.xlu0 0
      %598 = vperm.xlu0 %597, %v590
      %v599 = vpop.permute.xlu0 %598
      %v603 = vunpack.c.l.b16 %v578
      %v604 = vunpack.c.l.b16 %v579
      %v605 = vpack.c.b16 %v604, %v603
      %v615 = vunpack.c.l.b16 %v580
      %v616 = vunpack.c.l.b16 %v581
      %v617 = vunpack.c.l.b16 %v582
      %v618 = vunpack.c.l.b16 %v583
      %v619 = vunpack.c.l.b16 %v584
      %v620 = vunpack.c.l.b16 %v585
      %v621 = vunpack.c.l.b16 %v586
      %v622 = vunpack.c.l.b16 %v587
      %v623 = vunpack.c.l.b16 %v588
      %v624 = vpack.c.b16 %v616, %v615
      %v625 = vpack.c.b16 %v618, %v617
      %v626 = vpack.c.b16 %v620, %v619
      %v627 = vpack.c.b16 %v622, %v621
      %v628 = vpack.c.b16 %v623, %v623
      %vm633 = vcmask 588800
      %v635 = vsel %vm633, %v605, 0
      %vm637 = vcmask 1043456
      %v639 = vsel %vm637, %v628, 0
      %641 = vmatprep.subr.bf16.mxu0 0
      %642 = vmatpush1.bf16.msra.mxu0 %v624
      %643 = vmatprep.subr.bf16.mxu0 0
      %644 = vmatpush1.bf16.msra.mxu0 %v625
      %645 = vmatprep.subr.bf16.mxu0 0
      %646 = vmatpush1.bf16.msra.mxu0 %v626
      %647 = vmatprep.subr.bf16.mxu0 0
      %648 = vmatpush1.bf16.msra.mxu0 %v627
      %649 = vmatprep.subr.bf16.mxu0 0
      %650 = vmatpush1.bf16.msra.mxu0 %v639
      %651 = vmatprep.subr.bf16.mxu0 0
      %652 = vmatpush1.bf16.msra.mxu0 0
      %653 = vmatprep.subr.bf16.mxu0 0
      %654 = vmatpush1.bf16.msra.mxu0 0
      %655 = vmatprep.subr.bf16.mxu0 0
      %656 = vmatpush1.bf16.msra.mxu0 0
      %657 = vmatprep.subr.bf16.mxu0 0
      %658 = vmatpush1.bf16.msra.mxu0 0
      %659 = vmatprep.subr.bf16.mxu0 0
      %660 = vmatpush1.bf16.msra.mxu0 0
      %661 = vmatprep.subr.bf16.mxu0 0
      %662 = vmatpush1.bf16.msra.mxu0 0
      %663 = vmatprep.subr.bf16.mxu0 0
      %664 = vmatpush1.bf16.msra.mxu0 0
      %665 = vmatprep.subr.bf16.mxu0 0
      %666 = vmatpush1.bf16.msra.mxu0 0
      %667 = vmatprep.subr.bf16.mxu0 0
      %668 = vmatpush1.bf16.msra.mxu0 0
      %669 = vmatprep.subr.bf16.mxu0 0
      %670 = vmatpush1.bf16.msra.mxu0 0
      %671 = vmatprep.subr.bf16.mxu0 0
      %672 = vmatpush1.bf16.msra.mxu0 0
      %673 = vmatprep.mubr.bf16.mxu0 0
      %674 = vmatmul.mubr.bf16.gmra.mrb[0].mxu0 %v635
      %v675 = vpop.f32.mrb[0].mxu0
      %v676 = vadd.f32 %v594, %v675
      %v677 = vpop.f32.mrb[0].mxu0
      %v678 = vpop.f32.mrb[0].mxu0
      %v679 = vadd.f32 %v599, %v678
      %v680 = vpop.f32.mrb[0].mxu0
      %681 = vdwg.mxu0
      %v682 = vxor.u32 %v676, 2147483648
      %v683 = vmul.f32 %v682, 1.442695
      %v684 = vpow.pop %v683
      %v685 = vadd.f32 %v684, 1.0
      %v686 = vrcp.pop %v685
      %v687 = vmul.f32 1.0, %v686
      %v688 = vtanh.pop %v679
      %v689 = vmul.f32 %v688, %v687
      %690 = vst [vmem:[%s249] sm:$0xff] %v689
      %p691 = scmp.lt.s32.totalorder %s17, 1
      %s692 = scalar_select %p691, %s17, 1
      %s693 = smul.addr %s692, 8
      %s694 = scalar_lea.vmem %s6, %s693
      // Predicated region
      $region45: #{encoder_forward.2} parent=43 // pred_check
        %p695 = pneg %p166
      $region46: #{encoder_forward.2} parent=43 // pred_check_branch
        %697 = sbr.rel (%p695) target = $region48
      $region47: #{encoder_forward.2} parent=43 // pred_region
        _
      $region48: #{encoder_forward.2} parent=43 // pred_fallthru
        _
    $region44: #{encoder_forward.2} parent=5 // pred_fallthru
      _
    %p698 = scmp.le.s32.totalorder 2, %s12
    // Predicated region
    $region49: #{encoder_forward.2} parent=5 // pred_check
      %p699 = pneg %p698
    $region50: #{encoder_forward.2} parent=5 // pred_check_branch
      %701 = sbr.rel (%p699) target = $region52
    $region51: #{encoder_forward.2} parent=5 // pred_region
      %s702 = ssub.s32 %s12, 2
      // Predicated region
      $region53: #{encoder_forward.2} parent=51 // pred_check
        %p703 = pneg %p172
      $region54: #{encoder_forward.2} parent=51 // pred_check_branch
        %705 = sbr.rel (%p703) target = $region56
      $region55: #{encoder_forward.2} parent=51 // pred_region
        %p706 = scmp.lt.s32.totalorder %s18, 1
        %s707 = scalar_select %p706, %s18, 1
        %s708 = smul.addr %s707, 8
        %s709 = scalar_lea.vmem %s6, %s708
      $region56: #{encoder_forward.2} parent=51 // pred_fallthru
        _
    $region52: #{encoder_forward.2} parent=5 // pred_fallthru
      _
  $region6: #{encoder_forward.2} parent=0 // loop_footer
    %s16 = sadd.s32 1, %s12
  $region7: #{encoder_forward.2} parent=0 // loop_footer_branch
    %11 = sbr.rel target = $region3
  $region8: #{encoder_forward.2} parent=0 // loop_exit
    _

// kernel: encoder_forward.3
$region0: #{encoder_forward.3}
  #allocation0 [shape = 'u32[]', space=smem, size = 0x4, offset = 0x4, fixed_abs, tag = 'smem constant byte address 0x4 - core index']
  #allocation1 [shape = 'u32[144,128]{1,0:T(1,128)}', space=vmem, size = 0x12000, scoped, tag = 'internal scratch']
  #allocation2 [shape = 'bf16[16,256]{1,0:T(16,128)(2,1)}', space=vmem, size = 0x2000, scoped, tag = 'scratch operand']
  #allocation3 [shape = 'bf16[128,128]{1,0:T(16,128)(2,1)}', space=vmem, size = 0x8000, scoped, tag = 'scratch operand']
  #allocation4 [shape = 'bf16[144,128]{1,0:T(16,128)(2,1)}', space=vmem, size = 0x9000, scoped, tag = 'scratch operand']
  %s0 = inlined_call_operand.vmem [shape: bf16[2,32,256], index: 0, kind: input, shape index: {}]
  %s1 = inlined_call_operand.vmem [shape: f32[1,128], index: 1, kind: input, shape index: {}]
  %s2 = inlined_call_operand.vmem [shape: bf16[16,128], index: 2, kind: input, shape index: {}]
  %s3 = inlined_call_operand.vmem [shape: f32[16,1], index: 3, kind: input, shape index: {}]
  %s4 = inlined_call_operand.vmem [shape: bf16[32,144], index: 4, kind: input, shape index: {}]
  %s5 = inlined_call_operand.vmem [shape: f32[32,1], index: 5, kind: input, shape index: {}]
  %s6 = inlined_call_operand.vmem [shape: f32[2,16,128], index: 6, kind: output, shape index: {}]
  %s7 = sld [smem:[#allocation0]]
  $region57: #{encoder_forward.3} parent=0
    _
  %s9 = ssub.s32 1, %s7
  %s10 = scalar_select 0, %s9, %s7
  loop: start=0, step=1, limit=4
  $region2: #{encoder_forward.3} parent=0 // loop_pre_header
    _
  $region3: #{encoder_forward.3} parent=0 // loop_header
    %s12 = sphi 0, %s16
    %p13 = scmp.ge.s32.totalorder %s12, 4
    %s22 = sphi 0, %s24
    %s25 = sphi 0, %s22
    %s26 = sphi 0, %s25
    %s42 = sphi 0, %s26
    %s46 = sphi 0, %s46
    %s48 = sphi 0, %s46
    %s49 = sphi 0, %s48
    %s63 = sphi 0, %s49
    %s67 = sphi 0, %s67
    %s69 = sphi 0, %s67
    %s70 = sphi 0, %s69
    %s84 = sphi 0, %s70
    %s88 = sphi 0, %s88
    %s90 = sphi 0, %s88
    %s91 = sphi 0, %s90
    %s105 = sphi 0, %s91
    %s109 = sphi 0, %s109
    %s111 = sphi 0, %s109
    %s112 = sphi 0, %s111
    %s126 = sphi 0, %s112
    %s130 = sphi 0, %s130
    %s132 = sphi 0, %s130
    %s133 = sphi 0, %s132
    %s147 = sphi 0, %s133
    %s153 = sphi 0, %s155
    %s156 = sphi 0, %s153
    %s157 = sphi 0, %s156
    %s173 = sphi 0, %s157
  $region4: #{encoder_forward.3} parent=0 // loop_header_branch
    %15 = sbr.rel (%p13) target = $region8
  $region5: #{encoder_forward.3} parent=0 // loop_body
    %s17 = ssub.s32 %s12, 1
    %s18 = ssub.s32 %s12, 2
    %s19 = sadd.s32 %s12, 1
    %s20 = ssub.s32 %s12, %s19
    %p21 = scmp.eq.s32.totalorder %s20, 0
    %s23 = sadd.s32 %s22, 1
    %s24 = scalar_select %p21, %s22, %s23
    %p27 = pneg %p21
    %p28 = scmp.eq.s32.totalorder %s12, 1
    %p29 = por %p27, %p28
    %p30 = scmp.ne.s32.totalorder %s22, %s25
    %p31 = scmp.eq.s32.totalorder %s12, 0
    %p32 = por %p30, %p31
    %p33 = scmp.ne.s32.totalorder %s22, %s25
    %p34 = scmp.eq.s32.totalorder %s17, 1
    %p35 = por %p33, %p34
    %p36 = scmp.ne.s32.totalorder %s25, %s26
    %p37 = scmp.eq.s32.totalorder %s17, 0
    %p38 = por %p36, %p37
    %p39 = scmp.ne.s32.totalorder %s25, %s26
    %p40 = scmp.eq.s32.totalorder %s18, 1
    %p41 = por %p39, %p40
    %p43 = scmp.ne.s32.totalorder %s26, %s42
    %p44 = scmp.eq.s32.totalorder %s18, 0
    %p45 = por %p43, %p44
    %s47 = sadd.s32 %s46, 1
    %p50 = scmp.eq.s32.totalorder %s12, 1
    %p51 = scmp.ne.s32.totalorder %s46, %s48
    %p52 = scmp.eq.s32.totalorder %s12, 0
    %p53 = por %p51, %p52
    %p54 = scmp.ne.s32.totalorder %s46, %s48
    %p55 = scmp.eq.s32.totalorder %s17, 1
    %p56 = por %p54, %p55
    %p57 = scmp.ne.s32.totalorder %s48, %s49
    %p58 = scmp.eq.s32.totalorder %s17, 0
    %p59 = por %p57, %p58
    %p60 = scmp.ne.s32.totalorder %s48, %s49
    %p61 = scmp.eq.s32.totalorder %s18, 1
    %p62 = por %p60, %p61
    %p64 = scmp.ne.s32.totalorder %s49, %s63
    %p65 = scmp.eq.s32.totalorder %s18, 0
    %p66 = por %p64, %p65
    %s68 = sadd.s32 %s67, 1
    %p71 = scmp.eq.s32.totalorder %s12, 1
    %p72 = scmp.ne.s32.totalorder %s67, %s69
    %p73 = scmp.eq.s32.totalorder %s12, 0
    %p74 = por %p72, %p73
    %p75 = scmp.ne.s32.totalorder %s67, %s69
    %p76 = scmp.eq.s32.totalorder %s17, 1
    %p77 = por %p75, %p76
    %p78 = scmp.ne.s32.totalorder %s69, %s70
    %p79 = scmp.eq.s32.totalorder %s17, 0
    %p80 = por %p78, %p79
    %p81 = scmp.ne.s32.totalorder %s69, %s70
    %p82 = scmp.eq.s32.totalorder %s18, 1
    %p83 = por %p81, %p82
    %p85 = scmp.ne.s32.totalorder %s70, %s84
    %p86 = scmp.eq.s32.totalorder %s18, 0
    %p87 = por %p85, %p86
    %s89 = sadd.s32 %s88, 1
    %p92 = scmp.eq.s32.totalorder %s12, 1
    %p93 = scmp.ne.s32.totalorder %s88, %s90
    %p94 = scmp.eq.s32.totalorder %s12, 0
    %p95 = por %p93, %p94
    %p96 = scmp.ne.s32.totalorder %s88, %s90
    %p97 = scmp.eq.s32.totalorder %s17, 1
    %p98 = por %p96, %p97
    %p99 = scmp.ne.s32.totalorder %s90, %s91
    %p100 = scmp.eq.s32.totalorder %s17, 0
    %p101 = por %p99, %p100
    %p102 = scmp.ne.s32.totalorder %s90, %s91
    %p103 = scmp.eq.s32.totalorder %s18, 1
    %p104 = por %p102, %p103
    %p106 = scmp.ne.s32.totalorder %s91, %s105
    %p107 = scmp.eq.s32.totalorder %s18, 0
    %p108 = por %p106, %p107
    %s110 = sadd.s32 %s109, 1
    %p113 = scmp.eq.s32.totalorder %s12, 1
    %p114 = scmp.ne.s32.totalorder %s109, %s111
    %p115 = scmp.eq.s32.totalorder %s12, 0
    %p116 = por %p114, %p115
    %p117 = scmp.ne.s32.totalorder %s109, %s111
    %p118 = scmp.eq.s32.totalorder %s17, 1
    %p119 = por %p117, %p118
    %p120 = scmp.ne.s32.totalorder %s111, %s112
    %p121 = scmp.eq.s32.totalorder %s17, 0
    %p122 = por %p120, %p121
    %p123 = scmp.ne.s32.totalorder %s111, %s112
    %p124 = scmp.eq.s32.totalorder %s18, 1
    %p125 = por %p123, %p124
    %p127 = scmp.ne.s32.totalorder %s112, %s126
    %p128 = scmp.eq.s32.totalorder %s18, 0
    %p129 = por %p127, %p128
    %s131 = sadd.s32 %s130, 1
    %p134 = scmp.eq.s32.totalorder %s12, 1
    %p135 = scmp.ne.s32.totalorder %s130, %s132
    %p136 = scmp.eq.s32.totalorder %s12, 0
    %p137 = por %p135, %p136
    %p138 = scmp.ne.s32.totalorder %s130, %s132
    %p139 = scmp.eq.s32.totalorder %s17, 1
    %p140 = por %p138, %p139
    %p141 = scmp.ne.s32.totalorder %s132, %s133
    %p142 = scmp.eq.s32.totalorder %s17, 0
    %p143 = por %p141, %p142
    %p144 = scmp.ne.s32.totalorder %s132, %s133
    %p145 = scmp.eq.s32.totalorder %s18, 1
    %p146 = por %p144, %p145
    %p148 = scmp.ne.s32.totalorder %s133, %s147
    %p149 = scmp.eq.s32.totalorder %s18, 0
    %p150 = por %p148, %p149
    %s151 = ssub.s32 %s12, %s19
    %p152 = scmp.eq.s32.totalorder %s151, 0
    %s154 = sadd.s32 %s153, 1
    %s155 = scalar_select %p152, %s153, %s154
    %p158 = pneg %p152
    %p159 = scmp.eq.s32.totalorder %s12, 1
    %p160 = por %p158, %p159
    %p161 = scmp.ne.s32.totalorder %s153, %s156
    %p162 = scmp.eq.s32.totalorder %s12, 0
    %p163 = por %p161, %p162
    %p164 = scmp.ne.s32.totalorder %s153, %s156
    %p165 = scmp.eq.s32.totalorder %s17, 1
    %p166 = por %p164, %p165
    %p167 = scmp.ne.s32.totalorder %s156, %s157
    %p168 = scmp.eq.s32.totalorder %s17, 0
    %p169 = por %p167, %p168
    %p170 = scmp.ne.s32.totalorder %s156, %s157
    %p171 = scmp.eq.s32.totalorder %s18, 1
    %p172 = por %p170, %p171
    %p174 = scmp.ne.s32.totalorder %s157, %s173
    %p175 = scmp.eq.s32.totalorder %s18, 0
    %p176 = por %p174, %p175
    %p177 = scmp.le.s32.totalorder 1, %s12
    %p178 = scmp.lt.s32.totalorder %s12, 3
    %p179 = pnand %p177, %p178
    %p180 = pneg %p179
    // Predicated region
    $region9: #{encoder_forward.3} parent=5 // pred_check
      _
    $region10: #{encoder_forward.3} parent=5 // pred_check_branch
      %182 = sbr.rel (%p179) target = $region12
    $region11: #{encoder_forward.3} parent=5 // pred_region
      %s183 = ssub.s32 %s12, 1
      // Predicated region
      $region13: #{encoder_forward.3} parent=11 // pred_check
        %p184 = pneg %p59
      $region14: #{encoder_forward.3} parent=11 // pred_check_branch
        %186 = sbr.rel (%p184) target = $region16
      $region15: #{encoder_forward.3} parent=11 // pred_region
        _
      $region16: #{encoder_forward.3} parent=11 // pred_fallthru
        _
      // Predicated region
      $region17: #{encoder_forward.3} parent=11 // pred_check
        %p187 = pneg %p80
      $region18: #{encoder_forward.3} parent=11 // pred_check_branch
        %189 = sbr.rel (%p187) target = $region20
      $region19: #{encoder_forward.3} parent=11 // pred_region
        _
      $region20: #{encoder_forward.3} parent=11 // pred_fallthru
        _
      // Predicated region
      $region21: #{encoder_forward.3} parent=11 // pred_check
        %p190 = pneg %p101
      $region22: #{encoder_forward.3} parent=11 // pred_check_branch
        %192 = sbr.rel (%p190) target = $region24
      $region23: #{encoder_forward.3} parent=11 // pred_region
        _
      $region24: #{encoder_forward.3} parent=11 // pred_fallthru
        _
      // Predicated region
      $region25: #{encoder_forward.3} parent=11 // pred_check
        %p193 = pneg %p122
      $region26: #{encoder_forward.3} parent=11 // pred_check_branch
        %195 = sbr.rel (%p193) target = $region28
      $region27: #{encoder_forward.3} parent=11 // pred_region
        _
      $region28: #{encoder_forward.3} parent=11 // pred_fallthru
        _
      // Predicated region
      $region29: #{encoder_forward.3} parent=11 // pred_check
        %p196 = pneg %p143
      $region30: #{encoder_forward.3} parent=11 // pred_check_branch
        %198 = sbr.rel (%p196) target = $region32
      $region31: #{encoder_forward.3} parent=11 // pred_region
        _
      $region32: #{encoder_forward.3} parent=11 // pred_fallthru
        _
    $region12: #{encoder_forward.3} parent=5 // pred_fallthru
      _
    %p199 = scmp.lt.s32.totalorder %s12, 2
    // Predicated region
    $region33: #{encoder_forward.3} parent=5 // pred_check
      %p200 = pneg %p199
    $region34: #{encoder_forward.3} parent=5 // pred_check_branch
      %202 = sbr.rel (%p200) target = $region36
    $region35: #{encoder_forward.3} parent=5 // pred_region
      // Predicated region
      $region37: #{encoder_forward.3} parent=35 // pred_check
        %p203 = pneg %p32
      $region38: #{encoder_forward.3} parent=35 // pred_check_branch
        %205 = sbr.rel (%p203) target = $region40
      $region39: #{encoder_forward.3} parent=35 // pred_region
        %p206 = scmp.lt.s32.totalorder %s12, 1
        %s207 = scalar_select %p206, %s12, 1
        %s208 = smul.addr %s207, 8
        %s209 = smul.addr %s208, 4
        %s210 = scalar_lea.vmem %s0, %s209
      $region40: #{encoder_forward.3} parent=35 // pred_fallthru
        _
    $region36: #{encoder_forward.3} parent=5 // pred_fallthru
      _
    %p211 = scmp.le.s32.totalorder 1, %s12
    %p212 = scmp.lt.s32.totalorder %s12, 3
    %p213 = pnand %p211, %p212
    %p214 = pneg %p213
    // Predicated region
    $region41: #{encoder_forward.3} parent=5 // pred_check
      _
    $region42: #{encoder_forward.3} parent=5 // pred_check_branch
      %216 = sbr.rel (%p213) target = $region44
    $region43: #{encoder_forward.3} parent=5 // pred_region
      %s217 = ssub.s32 %s12, 1
      %p218 = scmp.lt.s32.totalorder %s17, 1
      %s219 = scalar_select %p218, %s17, 1
      %s220 = smul.addr %s219, 8
      %s221 = smul.addr %s220, 4
      %s222 = scalar_lea.vmem %s0, %s221
      %p223 = pneg %p38
      %p224 = pneg %p35
      %p225 = pneg %p59
      %p226 = pneg %p56
      %p227 = pneg %p80
      %p228 = pneg %p77
      %p229 = pneg %p101
      %p230 = pneg %p98
      %p231 = pneg %p122
      %p232 = pneg %p119
      %p233 = pneg %p143
      %p234 = pneg %p140
      %p235 = pneg %p169
      %p236 = pneg %p166
      %p237 = scmp.lt.s32.totalorder %s17, 1
      %s238 = scalar_select %p237, %s17, 1
      %s239 = smul.addr %s238, 2
      %s240 = smul.addr %s239, 8
      %s241 = scalar_lea.vmem %s6, %s240
      %p242 = scmp.lt.s32.totalorder %s17, 1
      %s243 = scalar_select %p242, %s17, 1
      %s244 = smul.addr %s243, 8
      %s245 = smul.addr %s244, 4
      %s246 = scalar_lea.vmem %s0, %s245
      %p247 = scmp.lt.s32.totalorder %s17, 1
      %s248 = scalar_select %p247, %s17, 1
      %s249 = smul.addr %s248, 2
      %s250 = smul.addr %s249, 8
      %s251 = scalar_lea.vmem %s6, %s250
      %v253 = vld [vmem:[%s246] sm:$0xf]
      %254 = vst [vmem:[#allocation3] sm:$0xf] %v253
      %v255 = vld [vmem:[%s246 + $0x8] sm:$0xf]
      %v257 = vunpack.c.l.b16 %v255
      %v258 = vpack.c.b16 %v257, %v257
      %260 = vst [vmem:[#allocation3] sm:$0xf0] %v258
      %v261 = vld [vmem:[%s246] sm:$0xff]
      %v263 = vunpack.c.l.b16 %v261
      %v264 = vunpack.c.h.b16 %v261
      %v265 = vpack.c.b16 %v263, %v263
      %v266 = vpack.c.b16 %v264, %v264
      %267 = vrot.lane.b32.xlu0 %v265, 127
      %v268 = vpop.permute.xlu0 %267
      %269 = vrot.lane.b32.xlu0 %v266, 127
      %v270 = vpop.permute.xlu0 %269
      %vm271 = vcmask 1039360
      %v272 = vsel %vm271, %v268, %v270
      %274 = vst [vmem:[#allocation3 + $0x8] sm:$0xf] %v272
      %v275 = vld [vmem:[%s246 + $0x8] sm:$0xff]
      %v277 = vunpack.c.l.b16 %v275
      %v278 = vunpack.c.h.b16 %v275
      %v279 = vpack.c.b16 %v277, %v277
      %v280 = vpack.c.b16 %v278, %v278
      %281 = vrot.lane.b32.xlu0 %v279, 127
      %v282 = vpop.permute.xlu0 %281
      %283 = vrot.lane.b32.xlu0 %v280, 127
      %v284 = vpop.permute.xlu0 %283
      %v285 = vsel %vm271, %v282, %v284
      %287 = vst [vmem:[#allocation3 + $0x8] sm:$0xf0] %v285
      %v288 = vld [vmem:[%s246 + $0x10] sm:$0xf]
      %289 = vst [vmem:[#allocation3 + $0x10] sm:$0xf] %v288
      %v290 = vld [vmem:[%s246 + $0x18] sm:$0xf]
      %v292 = vunpack.c.l.b16 %v290
      %v293 = vpack.c.b16 %v292, %v292
      %295 = vst [vmem:[#allocation3 + $0x10] sm:$0xf0] %v293
      %v296 = vld [vmem:[%s246 + $0x10] sm:$0xff]
      %v298 = vunpack.c.l.b16 %v296
      %v299 = vunpack.c.h.b16 %v296
      %v300 = vpack.c.b16 %v298, %v298
      %v301 = vpack.c.b16 %v299, %v299
      %302 = vrot.lane.b32.xlu0 %v300, 127
      %v303 = vpop.permute.xlu0 %302
      %304 = vrot.lane.b32.xlu0 %v301, 127
      %v305 = vpop.permute.xlu0 %304
      %v306 = vsel %vm271, %v303, %v305
      %308 = vst [vmem:[#allocation3 + $0x18] sm:$0xf] %v306
      %v309 = vld [vmem:[%s246 + $0x18] sm:$0xff]
      %v311 = vunpack.c.l.b16 %v309
      %v312 = vunpack.c.h.b16 %v309
      %v313 = vpack.c.b16 %v311, %v311
      %v314 = vpack.c.b16 %v312, %v312
      %315 = vrot.lane.b32.xlu0 %v313, 127
      %v316 = vpop.permute.xlu0 %315
      %317 = vrot.lane.b32.xlu0 %v314, 127
      %v318 = vpop.permute.xlu0 %317
      %v319 = vsel %vm271, %v316, %v318
      %321 = vst [vmem:[#allocation3 + $0x18] sm:$0xf0] %v319
      %v322 = vld [vmem:[%s246] sm:$0xff]
      %v324 = vunpack.c.l.b16 %v322
      %v325 = vunpack.c.h.b16 %v322
      %v326 = vpack.c.b16 %v324, %v324
      %v327 = vpack.c.b16 %v325, %v325
      %328 = vrot.lane.b32.xlu0 %v326, 122
      %v329 = vpop.permute.xlu0 %328
      %330 = vrot.lane.b32.xlu0 %v327, 122
      %v331 = vpop.permute.xlu0 %330
      %vm332 = vcmask 998400
      %v333 = vsel %vm332, %v329, %v331
      %335 = vst [vmem:[#allocation3 + $0x20] sm:$0xf] %v333
      %v336 = vld [vmem:[%s246 + $0x8] sm:$0xff]
      %v338 = vunpack.c.l.b16 %v336
      %v339 = vunpack.c.h.b16 %v336
      %v340 = vpack.c.b16 %v338, %v338
      %v341 = vpack.c.b16 %v339, %v339
      %342 = vrot.lane.b32.xlu0 %v340, 122
      %v343 = vpop.permute.xlu0 %342
      %344 = vrot.lane.b32.xlu0 %v341, 122
      %v345 = vpop.permute.xlu0 %344
      %v346 = vsel %vm332, %v343, %v345
      %348 = vst [vmem:[#allocation3 + $0x20] sm:$0xf0] %v346
      %v349 = vld [vmem:[%s246] sm:$0xff]
      %v351 = vunpack.c.l.b16 %v349
      %v352 = vunpack.c.h.b16 %v349
      %v353 = vpack.c.b16 %v351, %v351
      %v354 = vpack.c.b16 %v352, %v352
      %355 = vrot.lane.b32.xlu0 %v353, 121
      %v356 = vpop.permute.xlu0 %355
      %357 = vrot.lane.b32.xlu0 %v354, 121
      %v358 = vpop.permute.xlu0 %357
      %vm359 = vcmask 990208
      %v360 = vsel %vm359, %v356, %v358
      %362 = vst [vmem:[#allocation3 + $0x28] sm:$0xf] %v360
      %v363 = vld [vmem:[%s246 + $0x8] sm:$0xff]
      %v365 = vunpack.c.l.b16 %v363
      %v366 = vunpack.c.h.b16 %v363
      %v367 = vpack.c.b16 %v365, %v365
      %v368 = vpack.c.b16 %v366, %v366
      %369 = vrot.lane.b32.xlu0 %v367, 121
      %v370 = vpop.permute.xlu0 %369
      %371 = vrot.lane.b32.xlu0 %v368, 121
      %v372 = vpop.permute.xlu0 %371
      %v373 = vsel %vm359, %v370, %v372
      %375 = vst [vmem:[#allocation3 + $0x28] sm:$0xf0] %v373
      %v376 = vld [vmem:[%s246 + $0x10] sm:$0xff]
      %v378 = vunpack.c.l.b16 %v376
      %v379 = vunpack.c.h.b16 %v376
      %v380 = vpack.c.b16 %v378, %v378
      %v381 = vpack.c.b16 %v379, %v379
      %382 = vrot.lane.b32.xlu0 %v380, 122
      %v383 = vpop.permute.xlu0 %382
      %384 = vrot.lane.b32.xlu0 %v381, 122
      %v385 = vpop.permute.xlu0 %384
      %v386 = vsel %vm332, %v383, %v385
      %388 = vst [vmem:[#allocation3 + $0x30] sm:$0xf] %v386
      %v389 = vld [vmem:[%s246 + $0x18] sm:$0xff]
      %v391 = vunpack.c.l.b16 %v389
      %v392 = vunpack.c.h.b16 %v389
      %v393 = vpack.c.b16 %v391, %v391
      %v394 = vpack.c.b16 %v392, %v392
      %395 = vrot.lane.b32.xlu0 %v393, 122
      %v396 = vpop.permute.xlu0 %395
      %397 = vrot.lane.b32.xlu0 %v394, 122
      %v398 = vpop.permute.xlu0 %397
      %v399 = vsel %vm332, %v396, %v398
      %401 = vst [vmem:[#allocation3 + $0x30] sm:$0xf0] %v399
      %v402 = vld [vmem:[%s246 + $0x10] sm:$0xff]
      %v404 = vunpack.c.l.b16 %v402
      %v405 = vunpack.c.h.b16 %v402
      %v406 = vpack.c.b16 %v404, %v404
      %v407 = vpack.c.b16 %v405, %v405
      %408 = vrot.lane.b32.xlu0 %v406, 121
      %v409 = vpop.permute.xlu0 %408
      %410 = vrot.lane.b32.xlu0 %v407, 121
      %v411 = vpop.permute.xlu0 %410
      %v412 = vsel %vm359, %v409, %v411
      %414 = vst [vmem:[#allocation3 + $0x38] sm:$0xf] %v412
      %v415 = vld [vmem:[%s246 + $0x18] sm:$0xff]
      %v417 = vunpack.c.l.b16 %v415
      %v418 = vunpack.c.h.b16 %v415
      %v419 = vpack.c.b16 %v417, %v417
      %v420 = vpack.c.b16 %v418, %v418
      %421 = vrot.lane.b32.xlu0 %v419, 121
      %v422 = vpop.permute.xlu0 %421
      %423 = vrot.lane.b32.xlu0 %v420, 121
      %v424 = vpop.permute.xlu0 %423
      %v425 = vsel %vm359, %v422, %v424
      %427 = vst [vmem:[#allocation3 + $0x38] sm:$0xf0] %v425
      %v428 = vld [vmem:[%s2] sm:$0xf]
      %v429 = vld [vmem:[%s2 + $0x4] sm:$0xf]
      %v430 = vld [vmem:[#allocation3] sm:$0xff]
      %v431 = vld [vmem:[#allocation3 + $0x8] sm:$0xff]
      %v432 = vld [vmem:[#allocation3 + $0x10] sm:$0xff]
      %v433 = vld [vmem:[#allocation3 + $0x18] sm:$0xff]
      %v434 = vld [vmem:[#allocation3 + $0x20] sm:$0xff]
      %v435 = vld [vmem:[#allocation3 + $0x28] sm:$0xff]
      %v436 = vld [vmem:[#allocation3 + $0x30] sm:$0xff]
      %v437 = vld [vmem:[#allocation3 + $0x38] sm:$0xff]
      %v438 = vld [vmem:[%s3] sm:$0xff]
      %v439 = vld [vmem:[%s3 + $0x8] sm:$0xff]
      %441 = vset.pattern.permute.xlu0 0
      %442 = vperm.xlu0 %441, %v438
      %v443 = vpop.permute.xlu0 %442
      %446 = vset.pattern.permute.xlu0 0
      %447 = vperm.xlu0 %446, %v439
      %v448 = vpop.permute.xlu0 %447
      %v452 = vunpack.c.l.b16 %v428
      %v453 = vunpack.c.l.b16 %v429
      %v454 = vpack.c.b16 %v453, %v452
      %456 = vmatprep.subr.bf16.mxu0 0
      %457 = vmatpush1.bf16.msra.mxu0 %v430
      %458 = vmatprep.subr.bf16.mxu0 0
      %459 = vmatpush1.bf16.msra.mxu0 %v431
      %460 = vmatprep.subr.bf16.mxu0 0
      %461 = vmatpush1.bf16.msra.mxu0 %v432
      %462 = vmatprep.subr.bf16.mxu0 0
      %463 = vmatpush1.bf16.msra.mxu0 %v433
      %464 = vmatprep.subr.bf16.mxu0 0
      %465 = vmatpush1.bf16.msra.mxu0 %v434
      %466 = vmatprep.subr.bf16.mxu0 0
      %467 = vmatpush1.bf16.msra.mxu0 %v435
      %468 = vmatprep.subr.bf16.mxu0 0
      %469 = vmatpush1.bf16.msra.mxu0 %v436
      %470 = vmatprep.subr.bf16.mxu0 0
      %471 = vmatpush1.bf16.msra.mxu0 %v437
      %472 = vmatprep.subr.bf16.mxu0 0
      %473 = vmatpush1.bf16.msra.mxu0 0
      %474 = vmatprep.subr.bf16.mxu0 0
      %475 = vmatpush1.bf16.msra.mxu0 0
      %476 = vmatprep.subr.bf16.mxu0 0
      %477 = vmatpush1.bf16.msra.mxu0 0
      %478 = vmatprep.subr.bf16.mxu0 0
      %479 = vmatpush1.bf16.msra.mxu0 0
      %480 = vmatprep.subr.bf16.mxu0 0
      %481 = vmatpush1.bf16.msra.mxu0 0
      %482 = vmatprep.subr.bf16.mxu0 0
      %483 = vmatpush1.bf16.msra.mxu0 0
      %484 = vmatprep.subr.bf16.mxu0 0
      %485 = vmatpush1.bf16.msra.mxu0 0
      %486 = vmatprep.subr.bf16.mxu0 0
      %487 = vmatpush1.bf16.msra.mxu0 0
      %488 = vmatprep.mubr.bf16.mxu0 0
      %489 = vmatmul.mubr.bf16.gmra.mrb[0].mxu0 %v454
      %v490 = vpop.f32.mrb[0].mxu0
      %v491 = vadd.f32 %v443, %v490
      %v492 = vpop.f32.mrb[0].mxu0
      %v493 = vpop.f32.mrb[0].mxu0
      %v494 = vadd.f32 %v448, %v493
      %v495 = vpop.f32.mrb[0].mxu0
      %496 = vdwg.mxu0
      %vm497 = vcmp.ge.f32.partialorder %v491, 0.0
      %vm498 = vcmp.ge.f32.partialorder %v494, 0.0
      %v499 = vmul.f32 %v491, 0.2
      %v500 = vmul.f32 %v494, 0.2
      %v501 = vsel %vm497, %v491, %v499
      %v502 = vsel %vm498, %v494, %v500
      %v503 = vld [vmem:[%s1] sm:$0x1]
      %v505 = vlaneseq
      %v506 = vshrl.u32 %v505, 7
      %v507 = vsub.s32 0, %v506
      %v508 = vrot.slane %v503, %v507
      %v510 = vmul.f32 %v501, %v508
      %v511 = vmul.f32 %v502, %v508
      %512 = vst [vmem:[#allocation2] sm:$0xff] 0
      %513 = vst [vmem:[#allocation2 + $0x8] sm:$0xff] 0
      %v514 = vpack.c.bf16 %v511, %v510
      %516 = vrot.lane.b32.xlu0 %v514, 14
      %v517 = vpop.permute.xlu0 %516
      %vm519 = vcmask 1047664
      %520 = vst.msk [vmem:[#allocation2] sm:$0xff] %vm519, %v517
      %vm521 = vcmask 113664
      %522 = vst.msk [vmem:[#allocation2 + $0x8] sm:$0xff] %vm521, %v517
      %v523 = vld [vmem:[#allocation2] sm:$0xff]
      %524 = vst [vmem:[#allocation4] sm:$0xff] %v523
      %v525 = vld [vmem:[#allocation2] sm:$0xff]
      %v526 = vld [vmem:[#allocation2 + $0x8] sm:$0xff]
      %529 = vrot.lane.b32.xlu0 %v525, 127
      %v530 = vpop.permute.xlu0 %529
      %531 = vrot.lane.b32.xlu0 %v526, 127
      %v532 = vpop.permute.xlu0 %531
      %v533 = vsel %vm271, %v530, %v532
      %535 = vst [vmem:[#allocation4 + $0x8] sm:$0xff] %v533
      %v536 = vld [vmem:[#allocation2] sm:$0xff]
      %v537 = vld [vmem:[#allocation2 + $0x8] sm:$0xff]
      %540 = vrot.lane.b32.xlu0 %v536, 126
      %v541 = vpop.permute.xlu0 %540
      %542 = vrot.lane.b32.xlu0 %v537, 126
      %v543 = vpop.permute.xlu0 %542
      %vm544 = vcmask 1031168
      %v545 = vsel %vm544, %v541, %v543
      %547 = vst [vmem:[#allocation4 + $0x10] sm:$0xff] %v545
      %v548 = vld [vmem:[#allocation2] sm:$0xff]
      %v549 = vld [vmem:[#allocation2 + $0x8] sm:$0xff]
      %552 = vrot.lane.b32.xlu0 %v548, 122
      %v553 = vpop.permute.xlu0 %552
      %554 = vrot.lane.b32.xlu0 %v549, 122
      %v555 = vpop.permute.xlu0 %554
      %v556 = vsel %vm332, %v553, %v555
      %558 = vst [vmem:[#allocation4 + $0x18] sm:$0xff] %v556
      %v559 = vld [vmem:[#allocation2] sm:$0xff]
      %v560 = vld [vmem:[#allocation2 + $0x8] sm:$0xff]
      %563 = vrot.lane.b32.xlu0 %v559, 121
      %v564 = vpop.permute.xlu0 %563
      %565 = vrot.lane.b32.xlu0 %v560, 121
      %v566 = vpop.permute.xlu0 %565
      %v567 = vsel %vm359, %v564, %v566
      %569 = vst [vmem:[#allocation4 + $0x20] sm:$0xff] %v567
      %v570 = vld [vmem:[#allocation2] sm:$0xff]
      %v571 = vld [vmem:[#allocation2 + $0x8] sm:$0xff]
      %574 = vrot.lane.b32.xlu0 %v570, 120
      %v575 = vpop.permute.xlu0 %574
      %576 = vrot.lane.b32.xlu0 %v571, 120
      %v577 = vpop.permute.xlu0 %576
      %vm578 = vcmask 982016
      %v579 = vsel %vm578, %v575, %v577
      %581 = vst [vmem:[#allocation4 + $0x28] sm:$0xff] %v579
      %v582 = vld [vmem:[#allocation2] sm:$0xff]
      %v583 = vld [vmem:[#allocation2 + $0x8] sm:$0xff]
      %586 = vrot.lane.b32.xlu0 %v582, 116
      %v587 = vpop.permute.xlu0 %586
      %588 = vrot.lane.b32.xlu0 %v583, 116
      %v589 = vpop.permute.xlu0 %588
      %vm590 = vcmask 949248
      %v591 = vsel %vm590, %v587, %v589
      %593 = vst [vmem:[#allocation4 + $0x30] sm:$0xff] %v591
      %v594 = vld [vmem:[#allocation2] sm:$0xff]
      %v595 = vld [vmem:[#allocation2 + $0x8] sm:$0xff]
      %598 = vrot.lane.b32.xlu0 %v594, 115
      %v599 = vpop.permute.xlu0 %598
      %600 = vrot.lane.b32.xlu0 %v595, 115
      %v601 = vpop.permute.xlu0 %600
      %vm602 = vcmask 941056
      %v603 = vsel %vm602, %v599, %v601
      %605 = vst [vmem:[#allocation4 + $0x38] sm:$0xff] %v603
      %v606 = vld [vmem:[#allocation2] sm:$0xff]
      %v607 = vld [vmem:[#allocation2 + $0x8] sm:$0xff]
      %610 = vrot.lane.b32.xlu0 %v606, 114
      %v611 = vpop.permute.xlu0 %610
      %612 = vrot.lane.b32.xlu0 %v607, 114
      %v613 = vpop.permute.xlu0 %612
      %vm614 = vcmask 932864
      %v615 = vsel %vm614, %v611, %v613
      %617 = vst [vmem:[#allocation4 + $0x40] sm:$0xff] %v615
      %v618 = vld [vmem:[%s4] sm:$0xff]
      %v619 = vld [vmem:[%s4 + $0x8] sm:$0xff]
      %v620 = vld [vmem:[%s4 + $0x10] sm:$0xff]
      %v621 = vld [vmem:[%s4 + $0x18] sm:$0xff]
      %v622 = vld [vmem:[#allocation4] sm:$0xff]
      %v623 = vld [vmem:[#allocation4 + $0x8] sm:$0xff]
      %v624 = vld [vmem:[#allocation4 + $0x10] sm:$0xff]
      %v625 = vld [vmem:[#allocation4 + $0x18] sm:$0xff]
      %v626 = vld [vmem:[#allocation4 + $0x20] sm:$0xff]
      %v627 = vld [vmem:[#allocation4 + $0x28] sm:$0xff]
      %v628 = vld [vmem:[#allocation4 + $0x30] sm:$0xff]
      %v629 = vld [vmem:[#allocation4 + $0x38] sm:$0xff]
      %v630 = vld [vmem:[#allocation4 + $0x40] sm:$0xff]
      %v631 = vld [vmem:[%s5] sm:$0xff]
      %v632 = vld [vmem:[%s5 + $0x8] sm:$0xff]
      %v633 = vld [vmem:[%s5 + $0x10] sm:$0xff]
      %v634 = vld [vmem:[%s5 + $0x18] sm:$0xff]
      %636 = vset.pattern.permute.xlu0 0
      %637 = vperm.xlu0 %636, %v631
      %v638 = vpop.permute.xlu0 %637
      %641 = vset.pattern.permute.xlu0 0
      %642 = vperm.xlu0 %641, %v632
      %v643 = vpop.permute.xlu0 %642
      %646 = vset.pattern.permute.xlu0 0
      %647 = vperm.xlu0 %646, %v633
      %v648 = vpop.permute.xlu0 %647
      %651 = vset.pattern.permute.xlu0 0
      %652 = vperm.xlu0 %651, %v634
      %v653 = vpop.permute.xlu0 %652
      %v659 = vunpack.c.l.b16 %v618
      %v660 = vunpack.c.h.b16 %v618
      %v661 = vunpack.c.l.b16 %v619
      %v662 = vunpack.c.h.b16 %v619
      %v663 = vunpack.c.l.b16 %v620
      %v664 = vunpack.c.h.b16 %v620
      %v665 = vunpack.c.l.b16 %v621
      %v666 = vunpack.c.h.b16 %v621
      %v667 = vpack.c.b16 %v661, %v659
      %v668 = vpack.c.b16 %v662, %v660
      %v669 = vpack.c.b16 %v665, %v663
      %v670 = vpack.c.b16 %v666, %v664
      %vm673 = vcmask 130048
      %v675 = vsel %vm673, %v668, 0
      %v678 = vsel %vm673, %v670, 0
      %680 = vmatprep.subr.bf16.mxu0 0
      %681 = vmatpush1.bf16.msra.mxu0 %v622
      %682 = vmatprep.subr.bf16.mxu0 0
      %683 = vmatpush1.bf16.msra.mxu0 %v623
      %684 = vmatprep.subr.bf16.mxu0 0
      %685 = vmatpush1.bf16.msra.mxu0 %v624
      %686 = vmatprep.subr.bf16.mxu0 0
      %687 = vmatpush1.bf16.msra.mxu0 %v625
      %688 = vmatprep.subr.bf16.mxu0 0
      %689 = vmatpush1.bf16.msra.mxu0 %v626
      %690 = vmatprep.subr.bf16.mxu0 0
      %691 = vmatpush1.bf16.msra.mxu0 %v627
      %692 = vmatprep.subr.bf16.mxu0 0
      %693 = vmatpush1.bf16.msra.mxu0 %v628
      %694 = vmatprep.subr.bf16.mxu0 0
      %695 = vmatpush1.bf16.msra.mxu0 %v629
      %696 = vmatprep.subr.bf16.mxu0 0
      %697 = vmatpush1.bf16.msra.mxu0 %v630
      %698 = vmatprep.subr.bf16.mxu0 0
      %699 = vmatpush1.bf16.msra.mxu0 0
      %700 = vmatprep.subr.bf16.mxu0 0
      %701 = vmatpush1.bf16.msra.mxu0 0
      %702 = vmatprep.subr.bf16.mxu0 0
      %703 = vmatpush1.bf16.msra.mxu0 0
      %704 = vmatprep.subr.bf16.mxu0 0
      %705 = vmatpush1.bf16.msra.mxu0 0
      %706 = vmatprep.subr.bf16.mxu0 0
      %707 = vmatpush1.bf16.msra.mxu0 0
      %708 = vmatprep.subr.bf16.mxu0 0
      %709 = vmatpush1.bf16.msra.mxu0 0
      %710 = vmatprep.subr.bf16.mxu0 0
      %711 = vmatpush1.bf16.msra.mxu0 0
      %712 = vmatprep.mubr.bf16.mxu0 %v675
      %713 = vmatmul.mubr.bf16.gmra.mrb[0].mxu0 %v667
      %v714 = vpop.f32.mrb[0].mxu0
      %v715 = vadd.f32 %v638, %v714
      %v716 = vpop.f32.mrb[0].mxu0
      %v717 = vpop.f32.mrb[0].mxu0
      %v718 = vadd.f32 %v643, %v717
      %v719 = vpop.f32.mrb[0].mxu0
      %720 = vmatprep.mubr.bf16.mxu0 %v678
      %721 = vmatmul.mubr.bf16.gmra.mrb[0].mxu0 %v669
      %v722 = vpop.f32.mrb[0].mxu0
      %v723 = vadd.f32 %v648, %v722
      %v724 = vpop.f32.mrb[0].mxu0
      %v725 = vpop.f32.mrb[0].mxu0
      %v726 = vadd.f32 %v653, %v725
      %v727 = vpop.f32.mrb[0].mxu0
      %728 = vdwg.mxu0
      %v729 = vxor.u32 %v715, 2147483648
      %v730 = vxor.u32 %v718, 2147483648
      %v731 = vmul.f32 %v729, 1.442695
      %v732 = vpow.pop %v731
      %v733 = vmul.f32 %v730, 1.442695
      %v734 = vpow.pop %v733
      %v735 = vadd.f32 %v732, 1.0
      %v736 = vadd.f32 %v734, 1.0
      %v737 = vrcp.pop %v735
      %v738 = vmul.f32 1.0, %v737
      %v739 = vrcp.pop %v736
      %v740 = vmul.f32 1.0, %v739
      %v741 = vtanh.pop %v723
      %v742 = vtanh.pop %v726
      %v743 = vmul.f32 %v741, %v738
      %v744 = vmul.f32 %v742, %v740
      %745 = vst [vmem:[%s251] sm:$0xff] %v743
      %746 = vst [vmem:[%s251 + $0x8] sm:$0xff] %v744
      %p747 = scmp.lt.s32.totalorder %s17, 1
      %s748 = scalar_select %p747, %s17, 1
      %s749 = smul.addr %s748, 2
      %s750 = smul.addr %s749, 8
      %s751 = scalar_lea.vmem %s6, %s750
      // Predicated region
      $region45: #{encoder_forward.3} parent=43 // pred_check
        %p752 = pneg %p166
      $region46: #{encoder_forward.3} parent=43 // pred_check_branch
        %754 = sbr.rel (%p752) target = $region48
      $region47: #{encoder_forward.3} parent=43 // pred_region
        _
      $region48: #{encoder_forward.3} parent=43 // pred_fallthru
        _
    $region44: #{encoder_forward.3} parent=5 // pred_fallthru
      _
    %p755 = scmp.le.s32.totalorder 2, %s12
    // Predicated region
    $region49: #{encoder_forward.3} parent=5 // pred_check
      %p756 = pneg %p755
    $region50: #{encoder_forward.3} parent=5 // pred_check_branch
      %758 = sbr.rel (%p756) target = $region52
    $region51: #{encoder_forward.3} parent=5 // pred_region
      %s759 = ssub.s32 %s12, 2
      // Predicated region
      $region53: #{encoder_forward.3} parent=51 // pred_check
        %p760 = pneg %p172
      $region54: #{encoder_forward.3} parent=51 // pred_check_branch
        %762 = sbr.rel (%p760) target = $region56
      $region55: #{encoder_forward.3} parent=51 // pred_region
        %p763 = scmp.lt.s32.totalorder %s18, 1
        %s764 = scalar_select %p763, %s18, 1
        %s765 = smul.addr %s764, 2
        %s766 = smul.addr %s765, 8
        %s767 = scalar_lea.vmem %s6, %s766
      $region56: #{encoder_forward.3} parent=51 // pred_fallthru
        _
    $region52: #{encoder_forward.3} parent=5 // pred_fallthru
      _
  $region6: #{encoder_forward.3} parent=0 // loop_footer
    %s16 = sadd.s32 1, %s12
  $region7: #{encoder_forward.3} parent=0 // loop_footer_branch
    %11 = sbr.rel target = $region3
  $region8: #{encoder_forward.3} parent=0 // loop_exit
    _

</llo_original>
